<compile_context>
chip_gen: v6e
topology: v6e:2x2x1
jax: 0.10.0
libtpu: 0.0.40
codegen_flags: <defaults>
</compile_context>

<pallas_src>
import functools
import math

import jax
import jax.numpy as jnp
from jax.experimental import pallas as pl
from jax.experimental.pallas import tpu as pltpu


# --------------------------------------------------------------------------- #
# Kernel
# --------------------------------------------------------------------------- #
def _cnn_head_kernel(x0_ref, x1_ref, x2_ref, x3_ref,
                     w1_ref, b1_ref, w2_ref, b2_ref,
                     o_ref, *, tile_l2):
    """One tile of CNNHead.

    x{p}_ref : (Lp_pad, B)   phase-p of the input signal, x_p[j, b] = x[b, 4j+p]
    w1_ref   : (7, C1)       conv1 weights with eval-BN scale folded in
    b1_ref   : (1, C1)       conv1 bias with eval-BN shift folded in
    w2_ref   : (5, C1, D)    conv2 weights, laid out as (tap, Cin, Cout)
    b2_ref   : (1, D)
    o_ref    : (tile_l2, B, D)  output tile in the final (L2, B, D) layout
    """
    T = tile_l2
    Tp = T + 2                       # conv1 positions needed per phase (halo of 2)
    B = x0_ref.shape[1]
    C1 = w1_ref.shape[1]

    t0 = pl.program_id(0) * T        # first conv2-output position of this tile

    x_refs = (x0_ref, x1_ref, x2_ref, x3_ref)
    w1 = w1_ref[...]                 # (7, C1)
    b1 = b1_ref[...]                 # (1, C1)

    # Load each unique (phase, shift) slab once: contiguous dynamic slice.
    cache = {}

    def xslab(p, q):
        if (p, q) not in cache:
            cache[(p, q)] = x_refs[p][pl.ds(t0 + q, Tp), :]      # (Tp, B)
        return cache[(p, q)]

    def conv1_bn_silu(offset):
        # h[j] = SiLU(conv1+BN) at global conv1 position 2*(t0 + j) + offset,
        # j in [0, Tp).  x index of tap k is 4*(t0 + j) + 2*offset + k.
        acc = jnp.zeros((Tp, B, C1), jnp.float32) + b1[None, :, :]
        for k in range(7):
            kk = k + 2 * offset
            p, q = kk % 4, kk // 4
            acc = acc + xslab(p, q)[:, :, None] * w1[None, k:k + 1, :]
        return acc * jax.nn.sigmoid(acc)                         # SiLU

    h_even = conv1_bn_silu(0)        # (Tp, B, C1)  conv1 output at even positions
    h_odd = conv1_bn_silu(1)         # (Tp, B, C1)  conv1 output at odd positions

    w2 = w2_ref[...]                 # (5, C1, D)
    b2 = b2_ref[...]                 # (1, D)

    # conv2 (stride 2, k=5):  out[t] = sum_k h[2t+k] @ W2_k  -> 5 MXU matmuls.
    acc = jnp.einsum('tbc,cd->tbd', h_even[0:T], w2[0],
                     preferred_element_type=jnp.float32)
    acc = acc + jnp.einsum('tbc,cd->tbd', h_odd[0:T], w2[1],
                           preferred_element_type=jnp.float32)
    acc = acc + jnp.einsum('tbc,cd->tbd', h_even[1:T + 1], w2[2],
                           preferred_element_type=jnp.float32)
    acc = acc + jnp.einsum('tbc,cd->tbd', h_odd[1:T + 1], w2[3],
                           preferred_element_type=jnp.float32)
    acc = acc + jnp.einsum('tbc,cd->tbd', h_even[2:T + 2], w2[4],
                           preferred_element_type=jnp.float32)
    acc = acc + b2[None, :, :]

    o_ref[...] = acc.astype(o_ref.dtype)


# --------------------------------------------------------------------------- #
# Wrapper
# --------------------------------------------------------------------------- #
def cnn_head_forward(x, params, *, tile_l2=16):
    """CNNHead forward.  x: (B, 1, L) float32 -> (L2, B, D) float32."""
    x = jnp.asarray(x, jnp.float32)
    B, c_in, L = x.shape
    if c_in != 1:
        raise NotImplementedError("CNNHead spec uses in_chans=1")

    w1 = jnp.asarray(params["w1"], jnp.float32)          # (C1, 1, 7)
    b1 = jnp.asarray(params["b1"], jnp.float32)          # (C1,)
    gamma = jnp.asarray(params["bn_gamma"], jnp.float32)
    beta = jnp.asarray(params["bn_beta"], jnp.float32)
    mean = jnp.asarray(params["bn_mean"], jnp.float32)
    var = jnp.asarray(params["bn_var"], jnp.float32)
    eps = float(params["bn_eps"])
    w2 = jnp.asarray(params["w2"], jnp.float32)          # (D, C1, 5)
    b2 = jnp.asarray(params["b2"], jnp.float32)          # (D,)

    C1 = w1.shape[0]
    D = w2.shape[0]
    assert w1.shape[2] == 7 and w2.shape[2] == 5

    L1 = (L - 7) // 2 + 1
    L2 = (L1 - 5) // 2 + 1
    assert L2 >= 1, "input too short for CNNHead"

    # Fold eval-mode BatchNorm into conv1 (per-channel affine).
    # TODO(synk): training-mode BN with batch statistics would need a global
    # reduction pass; only the inference forward is implemented here.
    inv_std = 1.0 / jnp.sqrt(var + eps)
    scale = gamma * inv_std                                        # (C1,)
    w1_eff = (w1[:, 0, :] * scale[:, None]).T                      # (7, C1)
    b1_eff = ((b1 - mean) * scale + beta).reshape(1, C1)           # (1, C1)
    w2_eff = jnp.transpose(w2, (2, 1, 0))                          # (5, C1, D)
    b2_eff = b2.reshape(1, D)                                      # (1, D)

    # Tiling over the final output length.  Per-tile VMEM grows with
    # tile_l2 * B * (C1 + D); default 16 keeps production shapes well under the
    # scoped VMEM budget on all of v5e/v6e/v7x.
    tile = max(1, min(int(tile_l2), L2))
    n_tiles = pl.cdiv(L2, tile)
    l2_pad = n_tiles * tile
    lp_pad = l2_pad + 4              # per-phase x length needed by the last tile

    # Phase-split the (tiny) input so the kernel only does contiguous slices:
    # x_p[j, b] = x[b, 4j + p], zero-padded past the end.
    xs2 = x[:, 0, :]                                               # (B, L)
    x_phases = []
    for p in range(4):
        xp = xs2[:, p::4]
        pad = lp_pad - xp.shape[1]
        if pad > 0:
            xp = jnp.pad(xp, ((0, 0), (0, pad)))
        else:
            xp = xp[:, :lp_pad]
        x_phases.append(xp.T)                                      # (lp_pad, B)

    kernel = functools.partial(_cnn_head_kernel, tile_l2=tile)

    full2d = lambda i: (0, 0)
    full3d = lambda i: (0, 0, 0)

    out = pl.pallas_call(
        kernel,
        out_shape=jax.ShapeDtypeStruct((l2_pad, B, D), jnp.float32),
        grid_spec=pltpu.PrefetchScalarGridSpec(
            num_scalar_prefetch=0,
            grid=(n_tiles,),
            in_specs=[
                pl.BlockSpec((lp_pad, B), full2d),       # x phase 0 (resident)
                pl.BlockSpec((lp_pad, B), full2d),       # x phase 1
                pl.BlockSpec((lp_pad, B), full2d),       # x phase 2
                pl.BlockSpec((lp_pad, B), full2d),       # x phase 3
                pl.BlockSpec((7, C1), full2d),           # folded conv1 weights
                pl.BlockSpec((1, C1), full2d),           # folded conv1 bias
                pl.BlockSpec((5, C1, D), full3d),        # conv2 weights
                pl.BlockSpec((1, D), full2d),            # conv2 bias
            ],
            out_specs=pl.BlockSpec((tile, B, D), lambda i: (i, 0, 0)),
        ),
        compiler_params=pltpu.CompilerParams(
            dimension_semantics=("parallel",),           # tiles are independent
        ),
    )(*x_phases, w1_eff, b1_eff, w2_eff, b2_eff)

    return out[:L2]


# --------------------------------------------------------------------------- #
# Pure-JAX reference (for correctness check)
# --------------------------------------------------------------------------- #
def _conv1d_ref(x, w, b, stride):
    # x: (B, Cin, L); w: (Cout, Cin, K); b: (Cout,)
    B, Cin, L = x.shape
    Cout, _, K = w.shape
    Lout = (L - K) // stride + 1
    win = jnp.stack([x[:, :, k:k + stride * Lout:stride] for k in range(K)],
                    axis=-1)                                       # (B, Cin, Lout, K)
    return jnp.einsum('bclk,ock->bol', win, w) + b[None, :, None]


def cnn_head_reference(x, params):
    h = _conv1d_ref(x, params["w1"], params["b1"], 2)              # (B, C1, L1)
    inv = 1.0 / jnp.sqrt(params["bn_var"] + params["bn_eps"])
    h = ((h - params["bn_mean"][None, :, None]) * inv[None, :, None]
         * params["bn_gamma"][None, :, None] + params["bn_beta"][None, :, None])
    h = h * jax.nn.sigmoid(h)                                      # SiLU
    y = _conv1d_ref(h, params["w2"], params["b2"], 2)              # (B, D, L2)
    return jnp.transpose(y, (2, 0, 1))                             # (L2, B, D)


# --------------------------------------------------------------------------- #
# Demo
# --------------------------------------------------------------------------- #
if __name__ == "__main__":
    key = jax.random.PRNGKey(0)
    ks = jax.random.split(key, 9)

    B, c_in, L = 2, 1, 64
    embed_dim = 32
    C1, D = embed_dim // 2, embed_dim

    x = jax.random.normal(ks[0], (B, c_in, L), dtype=jnp.float32)
    params = dict(
        w1=0.2 * jax.random.normal(ks[1], (C1, c_in, 7), jnp.float32),
        b1=0.1 * jax.random.normal(ks[2], (C1,), jnp.float32),
        bn_gamma=1.0 + 0.1 * jax.random.normal(ks[3], (C1,), jnp.float32),
        bn_beta=0.1 * jax.random.normal(ks[4], (C1,), jnp.float32),
        bn_mean=0.1 * jax.random.normal(ks[5], (C1,), jnp.float32),
        bn_var=jnp.abs(1.0 + 0.1 * jax.random.normal(ks[6], (C1,), jnp.float32)),
        bn_eps=1e-5,
        w2=0.2 * jax.random.normal(ks[7], (D, C1, 5), jnp.float32),
        b2=0.1 * jax.random.normal(ks[8], (D,), jnp.float32),
    )

    # tile_l2=8 -> 2 grid tiles at this demo size (exercises the tiled path).
    y = cnn_head_forward(x, params, tile_l2=8)
    y = jax.block_until_ready(y)

    ref = cnn_head_reference(x, params)
    L1 = (L - 7) // 2 + 1
    L2 = (L1 - 5) // 2 + 1
    assert y.shape == (L2, B, D), y.shape
    err = float(jnp.max(jnp.abs(y - ref)))
    assert jnp.allclose(y, ref, atol=2e-3, rtol=2e-3), f"max abs err {err}"

    print("KERNEL_OK")
</pallas_src>

<mosaic_0001>
module attributes {stable_mosaic.version = 11 : i64} {
  func.func @_cnn_head_kernel(%arg0: i32, %arg1: memref<20x2xf32, #tpu.memory_space<vmem>>, %arg2: memref<20x2xf32, #tpu.memory_space<vmem>>, %arg3: memref<20x2xf32, #tpu.memory_space<vmem>>, %arg4: memref<20x2xf32, #tpu.memory_space<vmem>>, %arg5: memref<7x16xf32, #tpu.memory_space<vmem>>, %arg6: memref<1x16xf32, #tpu.memory_space<vmem>>, %arg7: memref<5x16x32xf32, #tpu.memory_space<vmem>>, %arg8: memref<1x32xf32, #tpu.memory_space<vmem>>, %arg9: memref<8x2x32xf32, #tpu.memory_space<vmem>>) attributes {dimension_semantics = [#tpu.dimension_semantics<parallel>], iteration_bounds = array<i64: 2>, scalar_prefetch = 0 : i64, scratch_operands = 0 : i64, tpu.core_type = #tpu.core_type<tc>, window_params = [{pipeline_mode = #tpu.pipeline_mode<synchronous>, transform_indices = @transform_0, window_bounds = array<i64: 20, 2>}, {pipeline_mode = #tpu.pipeline_mode<synchronous>, transform_indices = @transform_1, window_bounds = array<i64: 20, 2>}, {pipeline_mode = #tpu.pipeline_mode<synchronous>, transform_indices = @transform_2, window_bounds = array<i64: 20, 2>}, {pipeline_mode = #tpu.pipeline_mode<synchronous>, transform_indices = @transform_3, window_bounds = array<i64: 20, 2>}, {pipeline_mode = #tpu.pipeline_mode<synchronous>, transform_indices = @transform_4, window_bounds = array<i64: 7, 16>}, {pipeline_mode = #tpu.pipeline_mode<synchronous>, transform_indices = @transform_5, window_bounds = array<i64: 1, 16>}, {pipeline_mode = #tpu.pipeline_mode<synchronous>, transform_indices = @transform_6, window_bounds = array<i64: 5, 16, 32>}, {pipeline_mode = #tpu.pipeline_mode<synchronous>, transform_indices = @transform_7, window_bounds = array<i64: 1, 32>}, {transform_indices = @transform_8, window_bounds = array<i64: 8, 2, 32>}]} {
    %c8_i32 = arith.constant 8 : i32
    %0 = arith.muli %arg0, %c8_i32 : i32
    %c0 = arith.constant 0 : index
    %c0_0 = arith.constant 0 : index
    %1 = vector.load %arg5[%c0, %c0_0] : memref<7x16xf32, #tpu.memory_space<vmem>>, vector<7x16xf32>
    %c0_1 = arith.constant 0 : index
    %c0_2 = arith.constant 0 : index
    %2 = vector.load %arg6[%c0_1, %c0_2] : memref<1x16xf32, #tpu.memory_space<vmem>>, vector<1x16xf32>
    %cst = arith.constant 0.000000e+00 : f32
    %3 = vector.broadcast %cst : f32 to vector<10x2x16xf32>
    %4 = vector.shape_cast %2 : vector<1x16xf32> to vector<1x1x16xf32>
    %5 = vector.broadcast %4 : vector<1x1x16xf32> to vector<10x2x16xf32>
    %6 = arith.addf %3, %5 : vector<10x2x16xf32>
    %c0_i32 = arith.constant 0 : i32
    %7 = arith.addi %0, %c0_i32 : i32
    %8 = arith.index_cast %7 : i32 to index
    %c0_3 = arith.constant 0 : index
    %9 = vector.load %arg1[%8, %c0_3] : memref<20x2xf32, #tpu.memory_space<vmem>>, vector<10x2xf32>
    %10 = vector.shape_cast %9 : vector<10x2xf32> to vector<10x2x1xf32>
    %11 = vector.extract_strided_slice %1 {offsets = [0, 0], sizes = [1, 16], strides = [1, 1]} : vector<7x16xf32> to vector<1x16xf32>
    %12 = vector.shape_cast %11 : vector<1x16xf32> to vector<1x1x16xf32>
    %13 = vector.broadcast %10 : vector<10x2x1xf32> to vector<10x2x16xf32>
    %14 = vector.broadcast %12 : vector<1x1x16xf32> to vector<10x2x16xf32>
    %15 = arith.mulf %13, %14 : vector<10x2x16xf32>
    %16 = arith.addf %6, %15 : vector<10x2x16xf32>
    %c0_i32_4 = arith.constant 0 : i32
    %17 = arith.addi %0, %c0_i32_4 : i32
    %18 = arith.index_cast %17 : i32 to index
    %c0_5 = arith.constant 0 : index
    %19 = vector.load %arg2[%18, %c0_5] : memref<20x2xf32, #tpu.memory_space<vmem>>, vector<10x2xf32>
    %20 = vector.shape_cast %19 : vector<10x2xf32> to vector<10x2x1xf32>
    %21 = vector.extract_strided_slice %1 {offsets = [1, 0], sizes = [1, 16], strides = [1, 1]} : vector<7x16xf32> to vector<1x16xf32>
    %22 = vector.shape_cast %21 : vector<1x16xf32> to vector<1x1x16xf32>
    %23 = vector.broadcast %20 : vector<10x2x1xf32> to vector<10x2x16xf32>
    %24 = vector.broadcast %22 : vector<1x1x16xf32> to vector<10x2x16xf32>
    %25 = arith.mulf %23, %24 : vector<10x2x16xf32>
    %26 = arith.addf %16, %25 : vector<10x2x16xf32>
    %c0_i32_6 = arith.constant 0 : i32
    %27 = arith.addi %0, %c0_i32_6 : i32
    %28 = arith.index_cast %27 : i32 to index
    %c0_7 = arith.constant 0 : index
    %29 = vector.load %arg3[%28, %c0_7] : memref<20x2xf32, #tpu.memory_space<vmem>>, vector<10x2xf32>
    %30 = vector.shape_cast %29 : vector<10x2xf32> to vector<10x2x1xf32>
    %31 = vector.extract_strided_slice %1 {offsets = [2, 0], sizes = [1, 16], strides = [1, 1]} : vector<7x16xf32> to vector<1x16xf32>
    %32 = vector.shape_cast %31 : vector<1x16xf32> to vector<1x1x16xf32>
    %33 = vector.broadcast %30 : vector<10x2x1xf32> to vector<10x2x16xf32>
    %34 = vector.broadcast %32 : vector<1x1x16xf32> to vector<10x2x16xf32>
    %35 = arith.mulf %33, %34 : vector<10x2x16xf32>
    %36 = arith.addf %26, %35 : vector<10x2x16xf32>
    %c0_i32_8 = arith.constant 0 : i32
    %37 = arith.addi %0, %c0_i32_8 : i32
    %38 = arith.index_cast %37 : i32 to index
    %c0_9 = arith.constant 0 : index
    %39 = vector.load %arg4[%38, %c0_9] : memref<20x2xf32, #tpu.memory_space<vmem>>, vector<10x2xf32>
    %40 = vector.shape_cast %39 : vector<10x2xf32> to vector<10x2x1xf32>
    %41 = vector.extract_strided_slice %1 {offsets = [3, 0], sizes = [1, 16], strides = [1, 1]} : vector<7x16xf32> to vector<1x16xf32>
    %42 = vector.shape_cast %41 : vector<1x16xf32> to vector<1x1x16xf32>
    %43 = vector.broadcast %40 : vector<10x2x1xf32> to vector<10x2x16xf32>
    %44 = vector.broadcast %42 : vector<1x1x16xf32> to vector<10x2x16xf32>
    %45 = arith.mulf %43, %44 : vector<10x2x16xf32>
    %46 = arith.addf %36, %45 : vector<10x2x16xf32>
    %c1_i32 = arith.constant 1 : i32
    %47 = arith.addi %0, %c1_i32 : i32
    %48 = arith.index_cast %47 : i32 to index
    %c0_10 = arith.constant 0 : index
    %49 = vector.load %arg1[%48, %c0_10] : memref<20x2xf32, #tpu.memory_space<vmem>>, vector<10x2xf32>
    %50 = vector.shape_cast %49 : vector<10x2xf32> to vector<10x2x1xf32>
    %51 = vector.extract_strided_slice %1 {offsets = [4, 0], sizes = [1, 16], strides = [1, 1]} : vector<7x16xf32> to vector<1x16xf32>
    %52 = vector.shape_cast %51 : vector<1x16xf32> to vector<1x1x16xf32>
    %53 = vector.broadcast %50 : vector<10x2x1xf32> to vector<10x2x16xf32>
    %54 = vector.broadcast %52 : vector<1x1x16xf32> to vector<10x2x16xf32>
    %55 = arith.mulf %53, %54 : vector<10x2x16xf32>
    %56 = arith.addf %46, %55 : vector<10x2x16xf32>
    %c1_i32_11 = arith.constant 1 : i32
    %57 = arith.addi %0, %c1_i32_11 : i32
    %58 = arith.index_cast %57 : i32 to index
    %c0_12 = arith.constant 0 : index
    %59 = vector.load %arg2[%58, %c0_12] : memref<20x2xf32, #tpu.memory_space<vmem>>, vector<10x2xf32>
    %60 = vector.shape_cast %59 : vector<10x2xf32> to vector<10x2x1xf32>
    %61 = vector.extract_strided_slice %1 {offsets = [5, 0], sizes = [1, 16], strides = [1, 1]} : vector<7x16xf32> to vector<1x16xf32>
    %62 = vector.shape_cast %61 : vector<1x16xf32> to vector<1x1x16xf32>
    %63 = vector.broadcast %60 : vector<10x2x1xf32> to vector<10x2x16xf32>
    %64 = vector.broadcast %62 : vector<1x1x16xf32> to vector<10x2x16xf32>
    %65 = arith.mulf %63, %64 : vector<10x2x16xf32>
    %66 = arith.addf %56, %65 : vector<10x2x16xf32>
    %c1_i32_13 = arith.constant 1 : i32
    %67 = arith.addi %0, %c1_i32_13 : i32
    %68 = arith.index_cast %67 : i32 to index
    %c0_14 = arith.constant 0 : index
    %69 = vector.load %arg3[%68, %c0_14] : memref<20x2xf32, #tpu.memory_space<vmem>>, vector<10x2xf32>
    %70 = vector.shape_cast %69 : vector<10x2xf32> to vector<10x2x1xf32>
    %71 = vector.extract_strided_slice %1 {offsets = [6, 0], sizes = [1, 16], strides = [1, 1]} : vector<7x16xf32> to vector<1x16xf32>
    %72 = vector.shape_cast %71 : vector<1x16xf32> to vector<1x1x16xf32>
    %73 = vector.broadcast %70 : vector<10x2x1xf32> to vector<10x2x16xf32>
    %74 = vector.broadcast %72 : vector<1x1x16xf32> to vector<10x2x16xf32>
    %75 = arith.mulf %73, %74 : vector<10x2x16xf32>
    %76 = arith.addf %66, %75 : vector<10x2x16xf32>
    %77 = arith.negf %76 : vector<10x2x16xf32>
    %78 = math.exp %77 : vector<10x2x16xf32>
    %cst_15 = arith.constant 1.000000e+00 : f32
    %79 = vector.broadcast %cst_15 : f32 to vector<10x2x16xf32>
    %80 = arith.addf %79, %78 : vector<10x2x16xf32>
    %81 = arith.divf %79, %80 : vector<10x2x16xf32>
    %82 = arith.mulf %76, %81 : vector<10x2x16xf32>
    %cst_16 = arith.constant 0.000000e+00 : f32
    %83 = vector.broadcast %cst_16 : f32 to vector<10x2x16xf32>
    %84 = vector.shape_cast %2 : vector<1x16xf32> to vector<1x1x16xf32>
    %85 = vector.broadcast %84 : vector<1x1x16xf32> to vector<10x2x16xf32>
    %86 = arith.addf %83, %85 : vector<10x2x16xf32>
    %87 = vector.shape_cast %29 : vector<10x2xf32> to vector<10x2x1xf32>
    %88 = vector.extract_strided_slice %1 {offsets = [0, 0], sizes = [1, 16], strides = [1, 1]} : vector<7x16xf32> to vector<1x16xf32>
    %89 = vector.shape_cast %88 : vector<1x16xf32> to vector<1x1x16xf32>
    %90 = vector.broadcast %87 : vector<10x2x1xf32> to vector<10x2x16xf32>
    %91 = vector.broadcast %89 : vector<1x1x16xf32> to vector<10x2x16xf32>
    %92 = arith.mulf %90, %91 : vector<10x2x16xf32>
    %93 = arith.addf %86, %92 : vector<10x2x16xf32>
    %94 = vector.shape_cast %39 : vector<10x2xf32> to vector<10x2x1xf32>
    %95 = vector.extract_strided_slice %1 {offsets = [1, 0], sizes = [1, 16], strides = [1, 1]} : vector<7x16xf32> to vector<1x16xf32>
    %96 = vector.shape_cast %95 : vector<1x16xf32> to vector<1x1x16xf32>
    %97 = vector.broadcast %94 : vector<10x2x1xf32> to vector<10x2x16xf32>
    %98 = vector.broadcast %96 : vector<1x1x16xf32> to vector<10x2x16xf32>
    %99 = arith.mulf %97, %98 : vector<10x2x16xf32>
    %100 = arith.addf %93, %99 : vector<10x2x16xf32>
    %101 = vector.shape_cast %49 : vector<10x2xf32> to vector<10x2x1xf32>
    %102 = vector.extract_strided_slice %1 {offsets = [2, 0], sizes = [1, 16], strides = [1, 1]} : vector<7x16xf32> to vector<1x16xf32>
    %103 = vector.shape_cast %102 : vector<1x16xf32> to vector<1x1x16xf32>
    %104 = vector.broadcast %101 : vector<10x2x1xf32> to vector<10x2x16xf32>
    %105 = vector.broadcast %103 : vector<1x1x16xf32> to vector<10x2x16xf32>
    %106 = arith.mulf %104, %105 : vector<10x2x16xf32>
    %107 = arith.addf %100, %106 : vector<10x2x16xf32>
    %108 = vector.shape_cast %59 : vector<10x2xf32> to vector<10x2x1xf32>
    %109 = vector.extract_strided_slice %1 {offsets = [3, 0], sizes = [1, 16], strides = [1, 1]} : vector<7x16xf32> to vector<1x16xf32>
    %110 = vector.shape_cast %109 : vector<1x16xf32> to vector<1x1x16xf32>
    %111 = vector.broadcast %108 : vector<10x2x1xf32> to vector<10x2x16xf32>
    %112 = vector.broadcast %110 : vector<1x1x16xf32> to vector<10x2x16xf32>
    %113 = arith.mulf %111, %112 : vector<10x2x16xf32>
    %114 = arith.addf %107, %113 : vector<10x2x16xf32>
    %115 = vector.shape_cast %69 : vector<10x2xf32> to vector<10x2x1xf32>
    %116 = vector.extract_strided_slice %1 {offsets = [4, 0], sizes = [1, 16], strides = [1, 1]} : vector<7x16xf32> to vector<1x16xf32>
    %117 = vector.shape_cast %116 : vector<1x16xf32> to vector<1x1x16xf32>
    %118 = vector.broadcast %115 : vector<10x2x1xf32> to vector<10x2x16xf32>
    %119 = vector.broadcast %117 : vector<1x1x16xf32> to vector<10x2x16xf32>
    %120 = arith.mulf %118, %119 : vector<10x2x16xf32>
    %121 = arith.addf %114, %120 : vector<10x2x16xf32>
    %c1_i32_17 = arith.constant 1 : i32
    %122 = arith.addi %0, %c1_i32_17 : i32
    %123 = arith.index_cast %122 : i32 to index
    %c0_18 = arith.constant 0 : index
    %124 = vector.load %arg4[%123, %c0_18] : memref<20x2xf32, #tpu.memory_space<vmem>>, vector<10x2xf32>
    %125 = vector.shape_cast %124 : vector<10x2xf32> to vector<10x2x1xf32>
    %126 = vector.extract_strided_slice %1 {offsets = [5, 0], sizes = [1, 16], strides = [1, 1]} : vector<7x16xf32> to vector<1x16xf32>
    %127 = vector.shape_cast %126 : vector<1x16xf32> to vector<1x1x16xf32>
    %128 = vector.broadcast %125 : vector<10x2x1xf32> to vector<10x2x16xf32>
    %129 = vector.broadcast %127 : vector<1x1x16xf32> to vector<10x2x16xf32>
    %130 = arith.mulf %128, %129 : vector<10x2x16xf32>
    %131 = arith.addf %121, %130 : vector<10x2x16xf32>
    %c2_i32 = arith.constant 2 : i32
    %132 = arith.addi %0, %c2_i32 : i32
    %133 = arith.index_cast %132 : i32 to index
    %c0_19 = arith.constant 0 : index
    %134 = vector.load %arg1[%133, %c0_19] : memref<20x2xf32, #tpu.memory_space<vmem>>, vector<10x2xf32>
    %135 = vector.shape_cast %134 : vector<10x2xf32> to vector<10x2x1xf32>
    %136 = vector.extract_strided_slice %1 {offsets = [6, 0], sizes = [1, 16], strides = [1, 1]} : vector<7x16xf32> to vector<1x16xf32>
    %137 = vector.shape_cast %136 : vector<1x16xf32> to vector<1x1x16xf32>
    %138 = vector.broadcast %135 : vector<10x2x1xf32> to vector<10x2x16xf32>
    %139 = vector.broadcast %137 : vector<1x1x16xf32> to vector<10x2x16xf32>
    %140 = arith.mulf %138, %139 : vector<10x2x16xf32>
    %141 = arith.addf %131, %140 : vector<10x2x16xf32>
    %142 = arith.negf %141 : vector<10x2x16xf32>
    %143 = math.exp %142 : vector<10x2x16xf32>
    %cst_20 = arith.constant 1.000000e+00 : f32
    %144 = vector.broadcast %cst_20 : f32 to vector<10x2x16xf32>
    %145 = arith.addf %144, %143 : vector<10x2x16xf32>
    %146 = arith.divf %144, %145 : vector<10x2x16xf32>
    %147 = arith.mulf %141, %146 : vector<10x2x16xf32>
    %c0_21 = arith.constant 0 : index
    %c0_22 = arith.constant 0 : index
    %c0_23 = arith.constant 0 : index
    %148 = vector.load %arg7[%c0_21, %c0_22, %c0_23] : memref<5x16x32xf32, #tpu.memory_space<vmem>>, vector<5x16x32xf32>
    %c0_24 = arith.constant 0 : index
    %c0_25 = arith.constant 0 : index
    %149 = vector.load %arg8[%c0_24, %c0_25] : memref<1x32xf32, #tpu.memory_space<vmem>>, vector<1x32xf32>
    %150 = vector.extract_strided_slice %82 {offsets = [0, 0, 0], sizes = [8, 2, 16], strides = [1, 1, 1]} : vector<10x2x16xf32> to vector<8x2x16xf32>
    %151 = vector.extract_strided_slice %148 {offsets = [0, 0, 0], sizes = [1, 16, 32], strides = [1, 1, 1]} : vector<5x16x32xf32> to vector<1x16x32xf32>
    %152 = vector.shape_cast %151 : vector<1x16x32xf32> to vector<16x32xf32>
    "tpu.trace_start"() <{level = 10 : i32, message = "tbc,cd->tbd"}> : () -> ()
    %cst_26 = arith.constant dense<0.000000e+00> : vector<8x2x32xf32>
    %153 = tpu.matmul %150, %152, %cst_26 {dimension_numbers = #tpu.dot_dimension_numbers<[2], [0], [0, 1], [1], [0, 0, 0, 1, 1, 1], [], []>} : vector<8x2x16xf32>, vector<16x32xf32>, vector<8x2x32xf32> -> vector<8x2x32xf32>
    "tpu.trace_stop"() : () -> ()
    %154 = vector.extract_strided_slice %147 {offsets = [0, 0, 0], sizes = [8, 2, 16], strides = [1, 1, 1]} : vector<10x2x16xf32> to vector<8x2x16xf32>
    %155 = vector.extract_strided_slice %148 {offsets = [1, 0, 0], sizes = [1, 16, 32], strides = [1, 1, 1]} : vector<5x16x32xf32> to vector<1x16x32xf32>
    %156 = vector.shape_cast %155 : vector<1x16x32xf32> to vector<16x32xf32>
    "tpu.trace_start"() <{level = 10 : i32, message = "tbc,cd->tbd"}> : () -> ()
    %cst_27 = arith.constant dense<0.000000e+00> : vector<8x2x32xf32>
    %157 = tpu.matmul %154, %156, %cst_27 {dimension_numbers = #tpu.dot_dimension_numbers<[2], [0], [0, 1], [1], [0, 0, 0, 1, 1, 1], [], []>} : vector<8x2x16xf32>, vector<16x32xf32>, vector<8x2x32xf32> -> vector<8x2x32xf32>
    "tpu.trace_stop"() : () -> ()
    %158 = arith.addf %153, %157 : vector<8x2x32xf32>
    %159 = vector.extract_strided_slice %82 {offsets = [1, 0, 0], sizes = [8, 2, 16], strides = [1, 1, 1]} : vector<10x2x16xf32> to vector<8x2x16xf32>
    %160 = vector.extract_strided_slice %148 {offsets = [2, 0, 0], sizes = [1, 16, 32], strides = [1, 1, 1]} : vector<5x16x32xf32> to vector<1x16x32xf32>
    %161 = vector.shape_cast %160 : vector<1x16x32xf32> to vector<16x32xf32>
    "tpu.trace_start"() <{level = 10 : i32, message = "tbc,cd->tbd"}> : () -> ()
    %cst_28 = arith.constant dense<0.000000e+00> : vector<8x2x32xf32>
    %162 = tpu.matmul %159, %161, %cst_28 {dimension_numbers = #tpu.dot_dimension_numbers<[2], [0], [0, 1], [1], [0, 0, 0, 1, 1, 1], [], []>} : vector<8x2x16xf32>, vector<16x32xf32>, vector<8x2x32xf32> -> vector<8x2x32xf32>
    "tpu.trace_stop"() : () -> ()
    %163 = arith.addf %158, %162 : vector<8x2x32xf32>
    %164 = vector.extract_strided_slice %147 {offsets = [1, 0, 0], sizes = [8, 2, 16], strides = [1, 1, 1]} : vector<10x2x16xf32> to vector<8x2x16xf32>
    %165 = vector.extract_strided_slice %148 {offsets = [3, 0, 0], sizes = [1, 16, 32], strides = [1, 1, 1]} : vector<5x16x32xf32> to vector<1x16x32xf32>
    %166 = vector.shape_cast %165 : vector<1x16x32xf32> to vector<16x32xf32>
    "tpu.trace_start"() <{level = 10 : i32, message = "tbc,cd->tbd"}> : () -> ()
    %cst_29 = arith.constant dense<0.000000e+00> : vector<8x2x32xf32>
    %167 = tpu.matmul %164, %166, %cst_29 {dimension_numbers = #tpu.dot_dimension_numbers<[2], [0], [0, 1], [1], [0, 0, 0, 1, 1, 1], [], []>} : vector<8x2x16xf32>, vector<16x32xf32>, vector<8x2x32xf32> -> vector<8x2x32xf32>
    "tpu.trace_stop"() : () -> ()
    %168 = arith.addf %163, %167 : vector<8x2x32xf32>
    %169 = vector.extract_strided_slice %82 {offsets = [2, 0, 0], sizes = [8, 2, 16], strides = [1, 1, 1]} : vector<10x2x16xf32> to vector<8x2x16xf32>
    %170 = vector.extract_strided_slice %148 {offsets = [4, 0, 0], sizes = [1, 16, 32], strides = [1, 1, 1]} : vector<5x16x32xf32> to vector<1x16x32xf32>
    %171 = vector.shape_cast %170 : vector<1x16x32xf32> to vector<16x32xf32>
    "tpu.trace_start"() <{level = 10 : i32, message = "tbc,cd->tbd"}> : () -> ()
    %cst_30 = arith.constant dense<0.000000e+00> : vector<8x2x32xf32>
    %172 = tpu.matmul %169, %171, %cst_30 {dimension_numbers = #tpu.dot_dimension_numbers<[2], [0], [0, 1], [1], [0, 0, 0, 1, 1, 1], [], []>} : vector<8x2x16xf32>, vector<16x32xf32>, vector<8x2x32xf32> -> vector<8x2x32xf32>
    "tpu.trace_stop"() : () -> ()
    %173 = arith.addf %168, %172 : vector<8x2x32xf32>
    %174 = vector.shape_cast %149 : vector<1x32xf32> to vector<1x1x32xf32>
    %175 = vector.broadcast %174 : vector<1x1x32xf32> to vector<8x2x32xf32>
    %176 = arith.addf %173, %175 : vector<8x2x32xf32>
    %c0_31 = arith.constant 0 : index
    %c0_32 = arith.constant 0 : index
    %c0_33 = arith.constant 0 : index
    %177 = vector.load %arg9[%c0_31, %c0_32, %c0_33] : memref<8x2x32xf32, #tpu.memory_space<vmem>>, vector<8x2x32xf32>
    tpu.vector_store %arg9[%c0_31, %c0_32, %c0_33], %176 {strides = array<i32>} : memref<8x2x32xf32, #tpu.memory_space<vmem>>, vector<8x2x32xf32>,
    return
  }
  func.func @transform_0(%arg0: i32) -> (i32, i32) {
    %c0_i32 = arith.constant 0 : i32
    %c0_i32_0 = arith.constant 0 : i32
    %c0_i32_1 = arith.constant 0 : i32
    return %c0_i32, %c0_i32_0 : i32, i32
  }
  func.func @transform_1(%arg0: i32) -> (i32, i32) {
    %c0_i32 = arith.constant 0 : i32
    %c0_i32_0 = arith.constant 0 : i32
    %c0_i32_1 = arith.constant 0 : i32
    return %c0_i32, %c0_i32_0 : i32, i32
  }
  func.func @transform_2(%arg0: i32) -> (i32, i32) {
    %c0_i32 = arith.constant 0 : i32
    %c0_i32_0 = arith.constant 0 : i32
    %c0_i32_1 = arith.constant 0 : i32
    return %c0_i32, %c0_i32_0 : i32, i32
  }
  func.func @transform_3(%arg0: i32) -> (i32, i32) {
    %c0_i32 = arith.constant 0 : i32
    %c0_i32_0 = arith.constant 0 : i32
    %c0_i32_1 = arith.constant 0 : i32
    return %c0_i32, %c0_i32_0 : i32, i32
  }
  func.func @transform_4(%arg0: i32) -> (i32, i32) {
    %c0_i32 = arith.constant 0 : i32
    %c0_i32_0 = arith.constant 0 : i32
    %c0_i32_1 = arith.constant 0 : i32
    return %c0_i32, %c0_i32_0 : i32, i32
  }
  func.func @transform_5(%arg0: i32) -> (i32, i32) {
    %c0_i32 = arith.constant 0 : i32
    %c0_i32_0 = arith.constant 0 : i32
    %c0_i32_1 = arith.constant 0 : i32
    return %c0_i32, %c0_i32_0 : i32, i32
  }
  func.func @transform_6(%arg0: i32) -> (i32, i32, i32) {
    %c0_i32 = arith.constant 0 : i32
    %c0_i32_0 = arith.constant 0 : i32
    %c0_i32_1 = arith.constant 0 : i32
    %c0_i32_2 = arith.constant 0 : i32
    return %c0_i32, %c0_i32_0, %c0_i32_1 : i32, i32, i32
  }
  func.func @transform_7(%arg0: i32) -> (i32, i32) {
    %c0_i32 = arith.constant 0 : i32
    %c0_i32_0 = arith.constant 0 : i32
    %c0_i32_1 = arith.constant 0 : i32
    return %c0_i32, %c0_i32_0 : i32, i32
  }
  func.func @transform_8(%arg0: i32) -> (i32, i32, i32) {
    %c0_i32 = arith.constant 0 : i32
    %c0_i32_0 = arith.constant 0 : i32
    %c0_i32_1 = arith.constant 0 : i32
    return %arg0, %c0_i32, %c0_i32_0 : i32, i32, i32
  }
}

</mosaic_0001>

<llo_original>
// kernel: tpu_custom_call.1
$region0: #{tpu_custom_call.1}
  #allocation0 [shape = 'u32[]', space=smem, size = 0x4, offset = 0x4, fixed_abs, tag = 'smem constant byte address 0x4 - core index']
  #allocation1 [shape = 'u32[144,128]{1,0:T(1,128)}', space=vmem, size = 0x12000, scoped, tag = 'internal scratch']
  %s0 = inlined_call_operand.vmem [shape: f32[20,2], index: 0, kind: input, shape index: {}]
  %s1 = inlined_call_operand.vmem [shape: f32[20,2], index: 1, kind: input, shape index: {}]
  %s2 = inlined_call_operand.vmem [shape: f32[20,2], index: 2, kind: input, shape index: {}]
  %s3 = inlined_call_operand.vmem [shape: f32[20,2], index: 3, kind: input, shape index: {}]
  %s4 = inlined_call_operand.vmem [shape: f32[7,16], index: 4, kind: input, shape index: {}]
  %s5 = inlined_call_operand.vmem [shape: f32[1,16], index: 5, kind: input, shape index: {}]
  %s6 = inlined_call_operand.vmem [shape: f32[5,16,32], index: 6, kind: input, shape index: {}]
  %s7 = inlined_call_operand.vmem [shape: f32[1,32], index: 7, kind: input, shape index: {}]
  %s8 = inlined_call_operand.hbm [shape: f32[16,2,32], index: 8, kind: output, shape index: {}]
  %s9 = sld [smem:[#allocation0]]
  $region65: #{tpu_custom_call.1} parent=0
    _
  %s11 = ssub.s32 1, %s9
  %s12 = scalar_select 0, %s11, %s9
  $region1: #{tpu_custom_call.1} parent=0
    #allocation2 [shape = 'u8[16384]{0}', space=vmem, size = 0x4000, scoped, tag = 'output window, operand 0']
    #allocation3 [shape = 's32[2]{0}', space=sflag, size = 0x8, scoped, tag = 'scoped memory for tpu_custom_call.1']
    %13 = vsyncpa [#allocation3], 0
    %s14 = scalar_lea.sflag [#allocation3], 1
    %15 = vsyncpa %s14, 0
    loop: start=0, step=1, limit=4
    $region2: #{tpu_custom_call.1} parent=1 // loop_pre_header
      _
    $region3: #{tpu_custom_call.1} parent=1 // loop_header
      %s17 = sphi 0, %s21
      %p18 = scmp.ge.s32.totalorder %s17, 4
      %s25 = sphi 0, %s25
      %s27 = sphi 0, %s25
      %s28 = sphi 0, %s27
      %s42 = sphi 0, %s28
      %s46 = sphi 0, %s46
      %s48 = sphi 0, %s46
      %s49 = sphi 0, %s48
      %s63 = sphi 0, %s49
      %s67 = sphi 0, %s67
      %s69 = sphi 0, %s67
      %s70 = sphi 0, %s69
      %s84 = sphi 0, %s70
      %s88 = sphi 0, %s88
      %s90 = sphi 0, %s88
      %s91 = sphi 0, %s90
      %s105 = sphi 0, %s91
      %s109 = sphi 0, %s109
      %s111 = sphi 0, %s109
      %s112 = sphi 0, %s111
      %s126 = sphi 0, %s112
      %s130 = sphi 0, %s130
      %s132 = sphi 0, %s130
      %s133 = sphi 0, %s132
      %s147 = sphi 0, %s133
      %s151 = sphi 0, %s151
      %s153 = sphi 0, %s151
      %s154 = sphi 0, %s153
      %s168 = sphi 0, %s154
      %s172 = sphi 0, %s172
      %s174 = sphi 0, %s172
      %s175 = sphi 0, %s174
      %s189 = sphi 0, %s175
      %s195 = sphi 0, %s197
      %s198 = sphi 0, %s195
      %s199 = sphi 0, %s198
      %s215 = sphi 0, %s199
    $region4: #{tpu_custom_call.1} parent=1 // loop_header_branch
      %20 = sbr.rel (%p18) target = $region8
    $region5: #{tpu_custom_call.1} parent=1 // loop_body
      %s22 = ssub.s32 %s17, 1
      %s23 = ssub.s32 %s17, 2
      %s24 = sadd.s32 %s17, 1
      %s26 = sadd.s32 %s25, 1
      %p29 = scmp.eq.s32.totalorder %s17, 1
      %p30 = scmp.ne.s32.totalorder %s25, %s27
      %p31 = scmp.eq.s32.totalorder %s17, 0
      %p32 = por %p30, %p31
      %p33 = scmp.ne.s32.totalorder %s25, %s27
      %p34 = scmp.eq.s32.totalorder %s22, 1
      %p35 = por %p33, %p34
      %p36 = scmp.ne.s32.totalorder %s27, %s28
      %p37 = scmp.eq.s32.totalorder %s22, 0
      %p38 = por %p36, %p37
      %p39 = scmp.ne.s32.totalorder %s27, %s28
      %p40 = scmp.eq.s32.totalorder %s23, 1
      %p41 = por %p39, %p40
      %p43 = scmp.ne.s32.totalorder %s28, %s42
      %p44 = scmp.eq.s32.totalorder %s23, 0
      %p45 = por %p43, %p44
      %s47 = sadd.s32 %s46, 1
      %p50 = scmp.eq.s32.totalorder %s17, 1
      %p51 = scmp.ne.s32.totalorder %s46, %s48
      %p52 = scmp.eq.s32.totalorder %s17, 0
      %p53 = por %p51, %p52
      %p54 = scmp.ne.s32.totalorder %s46, %s48
      %p55 = scmp.eq.s32.totalorder %s22, 1
      %p56 = por %p54, %p55
      %p57 = scmp.ne.s32.totalorder %s48, %s49
      %p58 = scmp.eq.s32.totalorder %s22, 0
      %p59 = por %p57, %p58
      %p60 = scmp.ne.s32.totalorder %s48, %s49
      %p61 = scmp.eq.s32.totalorder %s23, 1
      %p62 = por %p60, %p61
      %p64 = scmp.ne.s32.totalorder %s49, %s63
      %p65 = scmp.eq.s32.totalorder %s23, 0
      %p66 = por %p64, %p65
      %s68 = sadd.s32 %s67, 1
      %p71 = scmp.eq.s32.totalorder %s17, 1
      %p72 = scmp.ne.s32.totalorder %s67, %s69
      %p73 = scmp.eq.s32.totalorder %s17, 0
      %p74 = por %p72, %p73
      %p75 = scmp.ne.s32.totalorder %s67, %s69
      %p76 = scmp.eq.s32.totalorder %s22, 1
      %p77 = por %p75, %p76
      %p78 = scmp.ne.s32.totalorder %s69, %s70
      %p79 = scmp.eq.s32.totalorder %s22, 0
      %p80 = por %p78, %p79
      %p81 = scmp.ne.s32.totalorder %s69, %s70
      %p82 = scmp.eq.s32.totalorder %s23, 1
      %p83 = por %p81, %p82
      %p85 = scmp.ne.s32.totalorder %s70, %s84
      %p86 = scmp.eq.s32.totalorder %s23, 0
      %p87 = por %p85, %p86
      %s89 = sadd.s32 %s88, 1
      %p92 = scmp.eq.s32.totalorder %s17, 1
      %p93 = scmp.ne.s32.totalorder %s88, %s90
      %p94 = scmp.eq.s32.totalorder %s17, 0
      %p95 = por %p93, %p94
      %p96 = scmp.ne.s32.totalorder %s88, %s90
      %p97 = scmp.eq.s32.totalorder %s22, 1
      %p98 = por %p96, %p97
      %p99 = scmp.ne.s32.totalorder %s90, %s91
      %p100 = scmp.eq.s32.totalorder %s22, 0
      %p101 = por %p99, %p100
      %p102 = scmp.ne.s32.totalorder %s90, %s91
      %p103 = scmp.eq.s32.totalorder %s23, 1
      %p104 = por %p102, %p103
      %p106 = scmp.ne.s32.totalorder %s91, %s105
      %p107 = scmp.eq.s32.totalorder %s23, 0
      %p108 = por %p106, %p107
      %s110 = sadd.s32 %s109, 1
      %p113 = scmp.eq.s32.totalorder %s17, 1
      %p114 = scmp.ne.s32.totalorder %s109, %s111
      %p115 = scmp.eq.s32.totalorder %s17, 0
      %p116 = por %p114, %p115
      %p117 = scmp.ne.s32.totalorder %s109, %s111
      %p118 = scmp.eq.s32.totalorder %s22, 1
      %p119 = por %p117, %p118
      %p120 = scmp.ne.s32.totalorder %s111, %s112
      %p121 = scmp.eq.s32.totalorder %s22, 0
      %p122 = por %p120, %p121
      %p123 = scmp.ne.s32.totalorder %s111, %s112
      %p124 = scmp.eq.s32.totalorder %s23, 1
      %p125 = por %p123, %p124
      %p127 = scmp.ne.s32.totalorder %s112, %s126
      %p128 = scmp.eq.s32.totalorder %s23, 0
      %p129 = por %p127, %p128
      %s131 = sadd.s32 %s130, 1
      %p134 = scmp.eq.s32.totalorder %s17, 1
      %p135 = scmp.ne.s32.totalorder %s130, %s132
      %p136 = scmp.eq.s32.totalorder %s17, 0
      %p137 = por %p135, %p136
      %p138 = scmp.ne.s32.totalorder %s130, %s132
      %p139 = scmp.eq.s32.totalorder %s22, 1
      %p140 = por %p138, %p139
      %p141 = scmp.ne.s32.totalorder %s132, %s133
      %p142 = scmp.eq.s32.totalorder %s22, 0
      %p143 = por %p141, %p142
      %p144 = scmp.ne.s32.totalorder %s132, %s133
      %p145 = scmp.eq.s32.totalorder %s23, 1
      %p146 = por %p144, %p145
      %p148 = scmp.ne.s32.totalorder %s133, %s147
      %p149 = scmp.eq.s32.totalorder %s23, 0
      %p150 = por %p148, %p149
      %s152 = sadd.s32 %s151, 1
      %p155 = scmp.eq.s32.totalorder %s17, 1
      %p156 = scmp.ne.s32.totalorder %s151, %s153
      %p157 = scmp.eq.s32.totalorder %s17, 0
      %p158 = por %p156, %p157
      %p159 = scmp.ne.s32.totalorder %s151, %s153
      %p160 = scmp.eq.s32.totalorder %s22, 1
      %p161 = por %p159, %p160
      %p162 = scmp.ne.s32.totalorder %s153, %s154
      %p163 = scmp.eq.s32.totalorder %s22, 0
      %p164 = por %p162, %p163
      %p165 = scmp.ne.s32.totalorder %s153, %s154
      %p166 = scmp.eq.s32.totalorder %s23, 1
      %p167 = por %p165, %p166
      %p169 = scmp.ne.s32.totalorder %s154, %s168
      %p170 = scmp.eq.s32.totalorder %s23, 0
      %p171 = por %p169, %p170
      %s173 = sadd.s32 %s172, 1
      %p176 = scmp.eq.s32.totalorder %s17, 1
      %p177 = scmp.ne.s32.totalorder %s172, %s174
      %p178 = scmp.eq.s32.totalorder %s17, 0
      %p179 = por %p177, %p178
      %p180 = scmp.ne.s32.totalorder %s172, %s174
      %p181 = scmp.eq.s32.totalorder %s22, 1
      %p182 = por %p180, %p181
      %p183 = scmp.ne.s32.totalorder %s174, %s175
      %p184 = scmp.eq.s32.totalorder %s22, 0
      %p185 = por %p183, %p184
      %p186 = scmp.ne.s32.totalorder %s174, %s175
      %p187 = scmp.eq.s32.totalorder %s23, 1
      %p188 = por %p186, %p187
      %p190 = scmp.ne.s32.totalorder %s175, %s189
      %p191 = scmp.eq.s32.totalorder %s23, 0
      %p192 = por %p190, %p191
      %s193 = ssub.s32 %s17, %s24
      %p194 = scmp.eq.s32.totalorder %s193, 0
      %s196 = sadd.s32 %s195, 1
      %s197 = scalar_select %p194, %s195, %s196
      %p200 = pneg %p194
      %p201 = scmp.eq.s32.totalorder %s17, 1
      %p202 = por %p200, %p201
      %p203 = scmp.ne.s32.totalorder %s195, %s198
      %p204 = scmp.eq.s32.totalorder %s17, 0
      %p205 = por %p203, %p204
      %p206 = scmp.ne.s32.totalorder %s195, %s198
      %p207 = scmp.eq.s32.totalorder %s22, 1
      %p208 = por %p206, %p207
      %p209 = scmp.ne.s32.totalorder %s198, %s199
      %p210 = scmp.eq.s32.totalorder %s22, 0
      %p211 = por %p209, %p210
      %p212 = scmp.ne.s32.totalorder %s198, %s199
      %p213 = scmp.eq.s32.totalorder %s23, 1
      %p214 = por %p212, %p213
      %p216 = scmp.ne.s32.totalorder %s199, %s215
      %p217 = scmp.eq.s32.totalorder %s23, 0
      %p218 = por %p216, %p217
      %p219 = scmp.le.s32.totalorder 1, %s17
      %p220 = scmp.lt.s32.totalorder %s17, 3
      %p221 = pnand %p219, %p220
      %p222 = pneg %p221
      // Predicated region
      $region9: #{tpu_custom_call.1} parent=5 // pred_check
        _
      $region10: #{tpu_custom_call.1} parent=5 // pred_check_branch
        %224 = sbr.rel (%p221) target = $region12
      $region11: #{tpu_custom_call.1} parent=5 // pred_region
        %s225 = ssub.s32 %s17, 1
        // Predicated region
        $region13: #{tpu_custom_call.1} parent=11 // pred_check
          %p226 = pneg %p38
        $region14: #{tpu_custom_call.1} parent=11 // pred_check_branch
          %228 = sbr.rel (%p226) target = $region16
        $region15: #{tpu_custom_call.1} parent=11 // pred_region
          _
        $region16: #{tpu_custom_call.1} parent=11 // pred_fallthru
          _
        // Predicated region
        $region17: #{tpu_custom_call.1} parent=11 // pred_check
          %p229 = pneg %p59
        $region18: #{tpu_custom_call.1} parent=11 // pred_check_branch
          %231 = sbr.rel (%p229) target = $region20
        $region19: #{tpu_custom_call.1} parent=11 // pred_region
          _
        $region20: #{tpu_custom_call.1} parent=11 // pred_fallthru
          _
        // Predicated region
        $region21: #{tpu_custom_call.1} parent=11 // pred_check
          %p232 = pneg %p80
        $region22: #{tpu_custom_call.1} parent=11 // pred_check_branch
          %234 = sbr.rel (%p232) target = $region24
        $region23: #{tpu_custom_call.1} parent=11 // pred_region
          _
        $region24: #{tpu_custom_call.1} parent=11 // pred_fallthru
          _
        // Predicated region
        $region25: #{tpu_custom_call.1} parent=11 // pred_check
          %p235 = pneg %p101
        $region26: #{tpu_custom_call.1} parent=11 // pred_check_branch
          %237 = sbr.rel (%p235) target = $region28
        $region27: #{tpu_custom_call.1} parent=11 // pred_region
          _
        $region28: #{tpu_custom_call.1} parent=11 // pred_fallthru
          _
        // Predicated region
        $region29: #{tpu_custom_call.1} parent=11 // pred_check
          %p238 = pneg %p122
        $region30: #{tpu_custom_call.1} parent=11 // pred_check_branch
          %240 = sbr.rel (%p238) target = $region32
        $region31: #{tpu_custom_call.1} parent=11 // pred_region
          _
        $region32: #{tpu_custom_call.1} parent=11 // pred_fallthru
          _
        // Predicated region
        $region33: #{tpu_custom_call.1} parent=11 // pred_check
          %p241 = pneg %p143
        $region34: #{tpu_custom_call.1} parent=11 // pred_check_branch
          %243 = sbr.rel (%p241) target = $region36
        $region35: #{tpu_custom_call.1} parent=11 // pred_region
          _
        $region36: #{tpu_custom_call.1} parent=11 // pred_fallthru
          _
        // Predicated region
        $region37: #{tpu_custom_call.1} parent=11 // pred_check
          %p244 = pneg %p164
        $region38: #{tpu_custom_call.1} parent=11 // pred_check_branch
          %246 = sbr.rel (%p244) target = $region40
        $region39: #{tpu_custom_call.1} parent=11 // pred_region
          _
        $region40: #{tpu_custom_call.1} parent=11 // pred_fallthru
          _
        // Predicated region
        $region41: #{tpu_custom_call.1} parent=11 // pred_check
          %p247 = pneg %p185
        $region42: #{tpu_custom_call.1} parent=11 // pred_check_branch
          %249 = sbr.rel (%p247) target = $region44
        $region43: #{tpu_custom_call.1} parent=11 // pred_region
          _
        $region44: #{tpu_custom_call.1} parent=11 // pred_fallthru
          _
      $region12: #{tpu_custom_call.1} parent=5 // pred_fallthru
        _
      %p250 = scmp.lt.s32.totalorder %s17, 2
      // Predicated region
      $region45: #{tpu_custom_call.1} parent=5 // pred_check
        %p251 = pneg %p250
      $region46: #{tpu_custom_call.1} parent=5 // pred_check_branch
        %253 = sbr.rel (%p251) target = $region48
      $region47: #{tpu_custom_call.1} parent=5 // pred_region
        _
      $region48: #{tpu_custom_call.1} parent=5 // pred_fallthru
        _
      %p254 = scmp.le.s32.totalorder 1, %s17
      %p255 = scmp.lt.s32.totalorder %s17, 3
      %p256 = pnand %p254, %p255
      %p257 = pneg %p256
      // Predicated region
      $region49: #{tpu_custom_call.1} parent=5 // pred_check
        _
      $region50: #{tpu_custom_call.1} parent=5 // pred_check_branch
        %259 = sbr.rel (%p256) target = $region52
      $region51: #{tpu_custom_call.1} parent=5 // pred_region
        %s260 = ssub.s32 %s17, 1
        %p261 = pneg %p38
        %p262 = pneg %p35
        %p263 = pneg %p59
        %p264 = pneg %p56
        %p265 = pneg %p80
        %p266 = pneg %p77
        %p267 = pneg %p101
        %p268 = pneg %p98
        %p269 = pneg %p122
        %p270 = pneg %p119
        %p271 = pneg %p143
        %p272 = pneg %p140
        %p273 = pneg %p164
        %p274 = pneg %p161
        %p275 = pneg %p185
        %p276 = pneg %p182
        %p277 = pneg %p211
        %p278 = pneg %p208
        %s279 = sand.u32 %s198, 1
        %s280 = scalar_lea.sflag [#allocation3], %s279
        %s281 = sand.u32 %s198, 1
        %s282 = smul.addr %s281, 16
        %s283 = scalar_lea.vmem [#allocation2], %s282
        %s284 = smul.u32 8, %s22
        %s285 = smul.u32 %s22, 8
        %v286 = vld [vmem:[%s4] sm:$0x7f]
        %v287 = vld [vmem:[%s5] sm:$0x1]
        %v289 = vlaneseq
        %v290 = vshrl.u32 %v289, 7
        %v291 = vsub.s32 0, %v290
        %v292 = vrot.slane %v287, %v291
        %v294 = vadd.f32 %v292, 0.0
        %s295 = scalar_lea.vmem %s0, %s285
        %v296 = vld [vmem:[%s295] sm:$0xff]
        %v297 = vld [vmem:[%s295 + $0x8] sm:$0x3]
        %v298 = vlaneseq
        %v299 = vshrl.u32 %v298, 7
        %v300 = vsub.s32 0, %v299
        %v301 = vrot.slane %v296, %v300
        %303 = vbcast.lane.b32.xlu0 %v301, 256
        %v304 = vpop.permute.xlu0 %303
        %v305 = vlaneseq
        %v306 = vshrl.u32 %v305, 7
        %v307 = vsub.s32 1, %v306
        %v308 = vrot.slane %v296, %v307
        %310 = vbcast.lane.b32.xlu0 %v308, 256
        %v311 = vpop.permute.xlu0 %310
        %v312 = vlaneseq
        %v313 = vshrl.u32 %v312, 7
        %v314 = vsub.s32 2, %v313
        %v315 = vrot.slane %v296, %v314
        %317 = vbcast.lane.b32.xlu0 %v315, 256
        %v318 = vpop.permute.xlu0 %317
        %v319 = vlaneseq
        %v320 = vshrl.u32 %v319, 7
        %v321 = vsub.s32 3, %v320
        %v322 = vrot.slane %v296, %v321
        %324 = vbcast.lane.b32.xlu0 %v322, 256
        %v325 = vpop.permute.xlu0 %324
        %v326 = vlaneseq
        %v327 = vshrl.u32 %v326, 7
        %v328 = vsub.s32 4, %v327
        %v329 = vrot.slane %v296, %v328
        %331 = vbcast.lane.b32.xlu0 %v329, 256
        %v332 = vpop.permute.xlu0 %331
        %v333 = vlaneseq
        %v334 = vshrl.u32 %v333, 7
        %v335 = vsub.s32 5, %v334
        %v336 = vrot.slane %v296, %v335
        %338 = vbcast.lane.b32.xlu0 %v336, 256
        %v339 = vpop.permute.xlu0 %338
        %v340 = vlaneseq
        %v341 = vshrl.u32 %v340, 7
        %v342 = vsub.s32 6, %v341
        %v343 = vrot.slane %v296, %v342
        %345 = vbcast.lane.b32.xlu0 %v343, 256
        %v346 = vpop.permute.xlu0 %345
        %v347 = vlaneseq
        %v348 = vshrl.u32 %v347, 7
        %v349 = vsub.s32 7, %v348
        %v350 = vrot.slane %v296, %v349
        %352 = vbcast.lane.b32.xlu0 %v350, 256
        %v353 = vpop.permute.xlu0 %352
        %v354 = vlaneseq
        %v355 = vshrl.u32 %v354, 7
        %v356 = vsub.s32 0, %v355
        %v357 = vrot.slane %v297, %v356
        %359 = vbcast.lane.b32.xlu0 %v357, 256
        %v360 = vpop.permute.xlu0 %359
        %v361 = vlaneseq
        %v362 = vshrl.u32 %v361, 7
        %v363 = vsub.s32 1, %v362
        %v364 = vrot.slane %v297, %v363
        %366 = vbcast.lane.b32.xlu0 %v364, 256
        %v367 = vpop.permute.xlu0 %366
        %v368 = vlaneseq
        %v369 = vshrl.u32 %v368, 7
        %v370 = vsub.s32 0, %v369
        %v371 = vrot.slane %v286, %v370
        %v372 = vmul.f32 %v304, %v371
        %v373 = vmul.f32 %v311, %v371
        %v374 = vmul.f32 %v318, %v371
        %v375 = vmul.f32 %v325, %v371
        %v376 = vmul.f32 %v332, %v371
        %v377 = vmul.f32 %v339, %v371
        %v378 = vmul.f32 %v346, %v371
        %v379 = vmul.f32 %v353, %v371
        %v380 = vmul.f32 %v360, %v371
        %v381 = vmul.f32 %v367, %v371
        %v382 = vadd.f32 %v294, %v372
        %v383 = vadd.f32 %v294, %v373
        %v384 = vadd.f32 %v294, %v374
        %v385 = vadd.f32 %v294, %v375
        %v386 = vadd.f32 %v294, %v376
        %v387 = vadd.f32 %v294, %v377
        %v388 = vadd.f32 %v294, %v378
        %v389 = vadd.f32 %v294, %v379
        %v390 = vadd.f32 %v294, %v380
        %v391 = vadd.f32 %v294, %v381
        %s392 = scalar_lea.vmem %s1, %s285
        %v393 = vld [vmem:[%s392] sm:$0xff]
        %v394 = vld [vmem:[%s392 + $0x8] sm:$0x3]
        %v395 = vlaneseq
        %v396 = vshrl.u32 %v395, 7
        %v397 = vsub.s32 0, %v396
        %v398 = vrot.slane %v393, %v397
        %400 = vbcast.lane.b32.xlu0 %v398, 256
        %v401 = vpop.permute.xlu0 %400
        %v402 = vlaneseq
        %v403 = vshrl.u32 %v402, 7
        %v404 = vsub.s32 1, %v403
        %v405 = vrot.slane %v393, %v404
        %407 = vbcast.lane.b32.xlu0 %v405, 256
        %v408 = vpop.permute.xlu0 %407
        %v409 = vlaneseq
        %v410 = vshrl.u32 %v409, 7
        %v411 = vsub.s32 2, %v410
        %v412 = vrot.slane %v393, %v411
        %414 = vbcast.lane.b32.xlu0 %v412, 256
        %v415 = vpop.permute.xlu0 %414
        %v416 = vlaneseq
        %v417 = vshrl.u32 %v416, 7
        %v418 = vsub.s32 3, %v417
        %v419 = vrot.slane %v393, %v418
        %421 = vbcast.lane.b32.xlu0 %v419, 256
        %v422 = vpop.permute.xlu0 %421
        %v423 = vlaneseq
        %v424 = vshrl.u32 %v423, 7
        %v425 = vsub.s32 4, %v424
        %v426 = vrot.slane %v393, %v425
        %428 = vbcast.lane.b32.xlu0 %v426, 256
        %v429 = vpop.permute.xlu0 %428
        %v430 = vlaneseq
        %v431 = vshrl.u32 %v430, 7
        %v432 = vsub.s32 5, %v431
        %v433 = vrot.slane %v393, %v432
        %435 = vbcast.lane.b32.xlu0 %v433, 256
        %v436 = vpop.permute.xlu0 %435
        %v437 = vlaneseq
        %v438 = vshrl.u32 %v437, 7
        %v439 = vsub.s32 6, %v438
        %v440 = vrot.slane %v393, %v439
        %442 = vbcast.lane.b32.xlu0 %v440, 256
        %v443 = vpop.permute.xlu0 %442
        %v444 = vlaneseq
        %v445 = vshrl.u32 %v444, 7
        %v446 = vsub.s32 7, %v445
        %v447 = vrot.slane %v393, %v446
        %449 = vbcast.lane.b32.xlu0 %v447, 256
        %v450 = vpop.permute.xlu0 %449
        %v451 = vlaneseq
        %v452 = vshrl.u32 %v451, 7
        %v453 = vsub.s32 0, %v452
        %v454 = vrot.slane %v394, %v453
        %456 = vbcast.lane.b32.xlu0 %v454, 256
        %v457 = vpop.permute.xlu0 %456
        %v458 = vlaneseq
        %v459 = vshrl.u32 %v458, 7
        %v460 = vsub.s32 1, %v459
        %v461 = vrot.slane %v394, %v460
        %463 = vbcast.lane.b32.xlu0 %v461, 256
        %v464 = vpop.permute.xlu0 %463
        %v465 = vlaneseq
        %v466 = vshrl.u32 %v465, 7
        %v467 = vsub.s32 1, %v466
        %v468 = vrot.slane %v286, %v467
        %v469 = vmul.f32 %v401, %v468
        %v470 = vmul.f32 %v408, %v468
        %v471 = vmul.f32 %v415, %v468
        %v472 = vmul.f32 %v422, %v468
        %v473 = vmul.f32 %v429, %v468
        %v474 = vmul.f32 %v436, %v468
        %v475 = vmul.f32 %v443, %v468
        %v476 = vmul.f32 %v450, %v468
        %v477 = vmul.f32 %v457, %v468
        %v478 = vmul.f32 %v464, %v468
        %v479 = vadd.f32 %v382, %v469
        %v480 = vadd.f32 %v383, %v470
        %v481 = vadd.f32 %v384, %v471
        %v482 = vadd.f32 %v385, %v472
        %v483 = vadd.f32 %v386, %v473
        %v484 = vadd.f32 %v387, %v474
        %v485 = vadd.f32 %v388, %v475
        %v486 = vadd.f32 %v389, %v476
        %v487 = vadd.f32 %v390, %v477
        %v488 = vadd.f32 %v391, %v478
        %s489 = scalar_lea.vmem %s2, %s285
        %v490 = vld [vmem:[%s489] sm:$0xff]
        %v491 = vld [vmem:[%s489 + $0x8] sm:$0x3]
        %v492 = vlaneseq
        %v493 = vshrl.u32 %v492, 7
        %v494 = vsub.s32 0, %v493
        %v495 = vrot.slane %v490, %v494
        %497 = vbcast.lane.b32.xlu0 %v495, 256
        %v498 = vpop.permute.xlu0 %497
        %v499 = vlaneseq
        %v500 = vshrl.u32 %v499, 7
        %v501 = vsub.s32 1, %v500
        %v502 = vrot.slane %v490, %v501
        %504 = vbcast.lane.b32.xlu0 %v502, 256
        %v505 = vpop.permute.xlu0 %504
        %v506 = vlaneseq
        %v507 = vshrl.u32 %v506, 7
        %v508 = vsub.s32 2, %v507
        %v509 = vrot.slane %v490, %v508
        %511 = vbcast.lane.b32.xlu0 %v509, 256
        %v512 = vpop.permute.xlu0 %511
        %v513 = vlaneseq
        %v514 = vshrl.u32 %v513, 7
        %v515 = vsub.s32 3, %v514
        %v516 = vrot.slane %v490, %v515
        %518 = vbcast.lane.b32.xlu0 %v516, 256
        %v519 = vpop.permute.xlu0 %518
        %v520 = vlaneseq
        %v521 = vshrl.u32 %v520, 7
        %v522 = vsub.s32 4, %v521
        %v523 = vrot.slane %v490, %v522
        %525 = vbcast.lane.b32.xlu0 %v523, 256
        %v526 = vpop.permute.xlu0 %525
        %v527 = vlaneseq
        %v528 = vshrl.u32 %v527, 7
        %v529 = vsub.s32 5, %v528
        %v530 = vrot.slane %v490, %v529
        %532 = vbcast.lane.b32.xlu0 %v530, 256
        %v533 = vpop.permute.xlu0 %532
        %v534 = vlaneseq
        %v535 = vshrl.u32 %v534, 7
        %v536 = vsub.s32 6, %v535
        %v537 = vrot.slane %v490, %v536
        %539 = vbcast.lane.b32.xlu0 %v537, 256
        %v540 = vpop.permute.xlu0 %539
        %v541 = vlaneseq
        %v542 = vshrl.u32 %v541, 7
        %v543 = vsub.s32 7, %v542
        %v544 = vrot.slane %v490, %v543
        %546 = vbcast.lane.b32.xlu0 %v544, 256
        %v547 = vpop.permute.xlu0 %546
        %v548 = vlaneseq
        %v549 = vshrl.u32 %v548, 7
        %v550 = vsub.s32 0, %v549
        %v551 = vrot.slane %v491, %v550
        %553 = vbcast.lane.b32.xlu0 %v551, 256
        %v554 = vpop.permute.xlu0 %553
        %v555 = vlaneseq
        %v556 = vshrl.u32 %v555, 7
        %v557 = vsub.s32 1, %v556
        %v558 = vrot.slane %v491, %v557
        %560 = vbcast.lane.b32.xlu0 %v558, 256
        %v561 = vpop.permute.xlu0 %560
        %v562 = vlaneseq
        %v563 = vshrl.u32 %v562, 7
        %v564 = vsub.s32 2, %v563
        %v565 = vrot.slane %v286, %v564
        %v566 = vmul.f32 %v498, %v565
        %v567 = vmul.f32 %v505, %v565
        %v568 = vmul.f32 %v512, %v565
        %v569 = vmul.f32 %v519, %v565
        %v570 = vmul.f32 %v526, %v565
        %v571 = vmul.f32 %v533, %v565
        %v572 = vmul.f32 %v540, %v565
        %v573 = vmul.f32 %v547, %v565
        %v574 = vmul.f32 %v554, %v565
        %v575 = vmul.f32 %v561, %v565
        %v576 = vadd.f32 %v479, %v566
        %v577 = vadd.f32 %v480, %v567
        %v578 = vadd.f32 %v481, %v568
        %v579 = vadd.f32 %v482, %v569
        %v580 = vadd.f32 %v483, %v570
        %v581 = vadd.f32 %v484, %v571
        %v582 = vadd.f32 %v485, %v572
        %v583 = vadd.f32 %v486, %v573
        %v584 = vadd.f32 %v487, %v574
        %v585 = vadd.f32 %v488, %v575
        %s586 = scalar_lea.vmem %s3, %s285
        %v587 = vld [vmem:[%s586] sm:$0xff]
        %v588 = vld [vmem:[%s586 + $0x8] sm:$0x3]
        %v589 = vlaneseq
        %v590 = vshrl.u32 %v589, 7
        %v591 = vsub.s32 0, %v590
        %v592 = vrot.slane %v587, %v591
        %594 = vbcast.lane.b32.xlu0 %v592, 256
        %v595 = vpop.permute.xlu0 %594
        %v596 = vlaneseq
        %v597 = vshrl.u32 %v596, 7
        %v598 = vsub.s32 1, %v597
        %v599 = vrot.slane %v587, %v598
        %601 = vbcast.lane.b32.xlu0 %v599, 256
        %v602 = vpop.permute.xlu0 %601
        %v603 = vlaneseq
        %v604 = vshrl.u32 %v603, 7
        %v605 = vsub.s32 2, %v604
        %v606 = vrot.slane %v587, %v605
        %608 = vbcast.lane.b32.xlu0 %v606, 256
        %v609 = vpop.permute.xlu0 %608
        %v610 = vlaneseq
        %v611 = vshrl.u32 %v610, 7
        %v612 = vsub.s32 3, %v611
        %v613 = vrot.slane %v587, %v612
        %615 = vbcast.lane.b32.xlu0 %v613, 256
        %v616 = vpop.permute.xlu0 %615
        %v617 = vlaneseq
        %v618 = vshrl.u32 %v617, 7
        %v619 = vsub.s32 4, %v618
        %v620 = vrot.slane %v587, %v619
        %622 = vbcast.lane.b32.xlu0 %v620, 256
        %v623 = vpop.permute.xlu0 %622
        %v624 = vlaneseq
        %v625 = vshrl.u32 %v624, 7
        %v626 = vsub.s32 5, %v625
        %v627 = vrot.slane %v587, %v626
        %629 = vbcast.lane.b32.xlu0 %v627, 256
        %v630 = vpop.permute.xlu0 %629
        %v631 = vlaneseq
        %v632 = vshrl.u32 %v631, 7
        %v633 = vsub.s32 6, %v632
        %v634 = vrot.slane %v587, %v633
        %636 = vbcast.lane.b32.xlu0 %v634, 256
        %v637 = vpop.permute.xlu0 %636
        %v638 = vlaneseq
        %v639 = vshrl.u32 %v638, 7
        %v640 = vsub.s32 7, %v639
        %v641 = vrot.slane %v587, %v640
        %643 = vbcast.lane.b32.xlu0 %v641, 256
        %v644 = vpop.permute.xlu0 %643
        %v645 = vlaneseq
        %v646 = vshrl.u32 %v645, 7
        %v647 = vsub.s32 0, %v646
        %v648 = vrot.slane %v588, %v647
        %650 = vbcast.lane.b32.xlu0 %v648, 256
        %v651 = vpop.permute.xlu0 %650
        %v652 = vlaneseq
        %v653 = vshrl.u32 %v652, 7
        %v654 = vsub.s32 1, %v653
        %v655 = vrot.slane %v588, %v654
        %657 = vbcast.lane.b32.xlu0 %v655, 256
        %v658 = vpop.permute.xlu0 %657
        %v659 = vlaneseq
        %v660 = vshrl.u32 %v659, 7
        %v661 = vsub.s32 3, %v660
        %v662 = vrot.slane %v286, %v661
        %v663 = vmul.f32 %v595, %v662
        %v664 = vmul.f32 %v602, %v662
        %v665 = vmul.f32 %v609, %v662
        %v666 = vmul.f32 %v616, %v662
        %v667 = vmul.f32 %v623, %v662
        %v668 = vmul.f32 %v630, %v662
        %v669 = vmul.f32 %v637, %v662
        %v670 = vmul.f32 %v644, %v662
        %v671 = vmul.f32 %v651, %v662
        %v672 = vmul.f32 %v658, %v662
        %v673 = vadd.f32 %v576, %v663
        %v674 = vadd.f32 %v577, %v664
        %v675 = vadd.f32 %v578, %v665
        %v676 = vadd.f32 %v579, %v666
        %v677 = vadd.f32 %v580, %v667
        %v678 = vadd.f32 %v581, %v668
        %v679 = vadd.f32 %v582, %v669
        %v680 = vadd.f32 %v583, %v670
        %v681 = vadd.f32 %v584, %v671
        %v682 = vadd.f32 %v585, %v672
        %s683 = sadd.s32 %s285, 1
        %s684 = scalar_lea.vmem %s0, %s683
        %v685 = vld [vmem:[%s684] sm:$0xff]
        %v686 = vld [vmem:[%s684 + $0x8] sm:$0x3]
        %v687 = vlaneseq
        %v688 = vshrl.u32 %v687, 7
        %v689 = vsub.s32 0, %v688
        %v690 = vrot.slane %v685, %v689
        %692 = vbcast.lane.b32.xlu0 %v690, 256
        %v693 = vpop.permute.xlu0 %692
        %v694 = vlaneseq
        %v695 = vshrl.u32 %v694, 7
        %v696 = vsub.s32 1, %v695
        %v697 = vrot.slane %v685, %v696
        %699 = vbcast.lane.b32.xlu0 %v697, 256
        %v700 = vpop.permute.xlu0 %699
        %v701 = vlaneseq
        %v702 = vshrl.u32 %v701, 7
        %v703 = vsub.s32 2, %v702
        %v704 = vrot.slane %v685, %v703
        %706 = vbcast.lane.b32.xlu0 %v704, 256
        %v707 = vpop.permute.xlu0 %706
        %v708 = vlaneseq
        %v709 = vshrl.u32 %v708, 7
        %v710 = vsub.s32 3, %v709
        %v711 = vrot.slane %v685, %v710
        %713 = vbcast.lane.b32.xlu0 %v711, 256
        %v714 = vpop.permute.xlu0 %713
        %v715 = vlaneseq
        %v716 = vshrl.u32 %v715, 7
        %v717 = vsub.s32 4, %v716
        %v718 = vrot.slane %v685, %v717
        %720 = vbcast.lane.b32.xlu0 %v718, 256
        %v721 = vpop.permute.xlu0 %720
        %v722 = vlaneseq
        %v723 = vshrl.u32 %v722, 7
        %v724 = vsub.s32 5, %v723
        %v725 = vrot.slane %v685, %v724
        %727 = vbcast.lane.b32.xlu0 %v725, 256
        %v728 = vpop.permute.xlu0 %727
        %v729 = vlaneseq
        %v730 = vshrl.u32 %v729, 7
        %v731 = vsub.s32 6, %v730
        %v732 = vrot.slane %v685, %v731
        %734 = vbcast.lane.b32.xlu0 %v732, 256
        %v735 = vpop.permute.xlu0 %734
        %v736 = vlaneseq
        %v737 = vshrl.u32 %v736, 7
        %v738 = vsub.s32 7, %v737
        %v739 = vrot.slane %v685, %v738
        %741 = vbcast.lane.b32.xlu0 %v739, 256
        %v742 = vpop.permute.xlu0 %741
        %v743 = vlaneseq
        %v744 = vshrl.u32 %v743, 7
        %v745 = vsub.s32 0, %v744
        %v746 = vrot.slane %v686, %v745
        %748 = vbcast.lane.b32.xlu0 %v746, 256
        %v749 = vpop.permute.xlu0 %748
        %v750 = vlaneseq
        %v751 = vshrl.u32 %v750, 7
        %v752 = vsub.s32 1, %v751
        %v753 = vrot.slane %v686, %v752
        %755 = vbcast.lane.b32.xlu0 %v753, 256
        %v756 = vpop.permute.xlu0 %755
        %v757 = vlaneseq
        %v758 = vshrl.u32 %v757, 7
        %v759 = vsub.s32 4, %v758
        %v760 = vrot.slane %v286, %v759
        %v761 = vmul.f32 %v693, %v760
        %v762 = vmul.f32 %v700, %v760
        %v763 = vmul.f32 %v707, %v760
        %v764 = vmul.f32 %v714, %v760
        %v765 = vmul.f32 %v721, %v760
        %v766 = vmul.f32 %v728, %v760
        %v767 = vmul.f32 %v735, %v760
        %v768 = vmul.f32 %v742, %v760
        %v769 = vmul.f32 %v749, %v760
        %v770 = vmul.f32 %v756, %v760
        %v771 = vadd.f32 %v673, %v761
        %v772 = vadd.f32 %v674, %v762
        %v773 = vadd.f32 %v675, %v763
        %v774 = vadd.f32 %v676, %v764
        %v775 = vadd.f32 %v677, %v765
        %v776 = vadd.f32 %v678, %v766
        %v777 = vadd.f32 %v679, %v767
        %v778 = vadd.f32 %v680, %v768
        %v779 = vadd.f32 %v681, %v769
        %v780 = vadd.f32 %v682, %v770
        %s781 = scalar_lea.vmem %s1, %s683
        %v782 = vld [vmem:[%s781] sm:$0xff]
        %v783 = vld [vmem:[%s781 + $0x8] sm:$0x3]
        %v784 = vlaneseq
        %v785 = vshrl.u32 %v784, 7
        %v786 = vsub.s32 0, %v785
        %v787 = vrot.slane %v782, %v786
        %789 = vbcast.lane.b32.xlu0 %v787, 256
        %v790 = vpop.permute.xlu0 %789
        %v791 = vlaneseq
        %v792 = vshrl.u32 %v791, 7
        %v793 = vsub.s32 1, %v792
        %v794 = vrot.slane %v782, %v793
        %796 = vbcast.lane.b32.xlu0 %v794, 256
        %v797 = vpop.permute.xlu0 %796
        %v798 = vlaneseq
        %v799 = vshrl.u32 %v798, 7
        %v800 = vsub.s32 2, %v799
        %v801 = vrot.slane %v782, %v800
        %803 = vbcast.lane.b32.xlu0 %v801, 256
        %v804 = vpop.permute.xlu0 %803
        %v805 = vlaneseq
        %v806 = vshrl.u32 %v805, 7
        %v807 = vsub.s32 3, %v806
        %v808 = vrot.slane %v782, %v807
        %810 = vbcast.lane.b32.xlu0 %v808, 256
        %v811 = vpop.permute.xlu0 %810
        %v812 = vlaneseq
        %v813 = vshrl.u32 %v812, 7
        %v814 = vsub.s32 4, %v813
        %v815 = vrot.slane %v782, %v814
        %817 = vbcast.lane.b32.xlu0 %v815, 256
        %v818 = vpop.permute.xlu0 %817
        %v819 = vlaneseq
        %v820 = vshrl.u32 %v819, 7
        %v821 = vsub.s32 5, %v820
        %v822 = vrot.slane %v782, %v821
        %824 = vbcast.lane.b32.xlu0 %v822, 256
        %v825 = vpop.permute.xlu0 %824
        %v826 = vlaneseq
        %v827 = vshrl.u32 %v826, 7
        %v828 = vsub.s32 6, %v827
        %v829 = vrot.slane %v782, %v828
        %831 = vbcast.lane.b32.xlu0 %v829, 256
        %v832 = vpop.permute.xlu0 %831
        %v833 = vlaneseq
        %v834 = vshrl.u32 %v833, 7
        %v835 = vsub.s32 7, %v834
        %v836 = vrot.slane %v782, %v835
        %838 = vbcast.lane.b32.xlu0 %v836, 256
        %v839 = vpop.permute.xlu0 %838
        %v840 = vlaneseq
        %v841 = vshrl.u32 %v840, 7
        %v842 = vsub.s32 0, %v841
        %v843 = vrot.slane %v783, %v842
        %845 = vbcast.lane.b32.xlu0 %v843, 256
        %v846 = vpop.permute.xlu0 %845
        %v847 = vlaneseq
        %v848 = vshrl.u32 %v847, 7
        %v849 = vsub.s32 1, %v848
        %v850 = vrot.slane %v783, %v849
        %852 = vbcast.lane.b32.xlu0 %v850, 256
        %v853 = vpop.permute.xlu0 %852
        %v854 = vlaneseq
        %v855 = vshrl.u32 %v854, 7
        %v856 = vsub.s32 5, %v855
        %v857 = vrot.slane %v286, %v856
        %v858 = vmul.f32 %v790, %v857
        %v859 = vmul.f32 %v797, %v857
        %v860 = vmul.f32 %v804, %v857
        %v861 = vmul.f32 %v811, %v857
        %v862 = vmul.f32 %v818, %v857
        %v863 = vmul.f32 %v825, %v857
        %v864 = vmul.f32 %v832, %v857
        %v865 = vmul.f32 %v839, %v857
        %v866 = vmul.f32 %v846, %v857
        %v867 = vmul.f32 %v853, %v857
        %v868 = vadd.f32 %v771, %v858
        %v869 = vadd.f32 %v772, %v859
        %v870 = vadd.f32 %v773, %v860
        %v871 = vadd.f32 %v774, %v861
        %v872 = vadd.f32 %v775, %v862
        %v873 = vadd.f32 %v776, %v863
        %v874 = vadd.f32 %v777, %v864
        %v875 = vadd.f32 %v778, %v865
        %v876 = vadd.f32 %v779, %v866
        %v877 = vadd.f32 %v780, %v867
        %s878 = scalar_lea.vmem %s2, %s683
        %v879 = vld [vmem:[%s878] sm:$0xff]
        %v880 = vld [vmem:[%s878 + $0x8] sm:$0x3]
        %v881 = vlaneseq
        %v882 = vshrl.u32 %v881, 7
        %v883 = vsub.s32 0, %v882
        %v884 = vrot.slane %v879, %v883
        %886 = vbcast.lane.b32.xlu0 %v884, 256
        %v887 = vpop.permute.xlu0 %886
        %v888 = vlaneseq
        %v889 = vshrl.u32 %v888, 7
        %v890 = vsub.s32 1, %v889
        %v891 = vrot.slane %v879, %v890
        %893 = vbcast.lane.b32.xlu0 %v891, 256
        %v894 = vpop.permute.xlu0 %893
        %v895 = vlaneseq
        %v896 = vshrl.u32 %v895, 7
        %v897 = vsub.s32 2, %v896
        %v898 = vrot.slane %v879, %v897
        %900 = vbcast.lane.b32.xlu0 %v898, 256
        %v901 = vpop.permute.xlu0 %900
        %v902 = vlaneseq
        %v903 = vshrl.u32 %v902, 7
        %v904 = vsub.s32 3, %v903
        %v905 = vrot.slane %v879, %v904
        %907 = vbcast.lane.b32.xlu0 %v905, 256
        %v908 = vpop.permute.xlu0 %907
        %v909 = vlaneseq
        %v910 = vshrl.u32 %v909, 7
        %v911 = vsub.s32 4, %v910
        %v912 = vrot.slane %v879, %v911
        %914 = vbcast.lane.b32.xlu0 %v912, 256
        %v915 = vpop.permute.xlu0 %914
        %v916 = vlaneseq
        %v917 = vshrl.u32 %v916, 7
        %v918 = vsub.s32 5, %v917
        %v919 = vrot.slane %v879, %v918
        %921 = vbcast.lane.b32.xlu0 %v919, 256
        %v922 = vpop.permute.xlu0 %921
        %v923 = vlaneseq
        %v924 = vshrl.u32 %v923, 7
        %v925 = vsub.s32 6, %v924
        %v926 = vrot.slane %v879, %v925
        %928 = vbcast.lane.b32.xlu0 %v926, 256
        %v929 = vpop.permute.xlu0 %928
        %v930 = vlaneseq
        %v931 = vshrl.u32 %v930, 7
        %v932 = vsub.s32 7, %v931
        %v933 = vrot.slane %v879, %v932
        %935 = vbcast.lane.b32.xlu0 %v933, 256
        %v936 = vpop.permute.xlu0 %935
        %v937 = vlaneseq
        %v938 = vshrl.u32 %v937, 7
        %v939 = vsub.s32 0, %v938
        %v940 = vrot.slane %v880, %v939
        %942 = vbcast.lane.b32.xlu0 %v940, 256
        %v943 = vpop.permute.xlu0 %942
        %v944 = vlaneseq
        %v945 = vshrl.u32 %v944, 7
        %v946 = vsub.s32 1, %v945
        %v947 = vrot.slane %v880, %v946
        %949 = vbcast.lane.b32.xlu0 %v947, 256
        %v950 = vpop.permute.xlu0 %949
        %v951 = vlaneseq
        %v952 = vshrl.u32 %v951, 7
        %v953 = vsub.s32 6, %v952
        %v954 = vrot.slane %v286, %v953
        %v955 = vmul.f32 %v887, %v954
        %v956 = vmul.f32 %v894, %v954
        %v957 = vmul.f32 %v901, %v954
        %v958 = vmul.f32 %v908, %v954
        %v959 = vmul.f32 %v915, %v954
        %v960 = vmul.f32 %v922, %v954
        %v961 = vmul.f32 %v929, %v954
        %v962 = vmul.f32 %v936, %v954
        %v963 = vmul.f32 %v943, %v954
        %v964 = vmul.f32 %v950, %v954
        %v965 = vadd.f32 %v868, %v955
        %v966 = vadd.f32 %v869, %v956
        %v967 = vadd.f32 %v870, %v957
        %v968 = vadd.f32 %v871, %v958
        %v969 = vadd.f32 %v872, %v959
        %v970 = vadd.f32 %v873, %v960
        %v971 = vadd.f32 %v874, %v961
        %v972 = vadd.f32 %v875, %v962
        %v973 = vadd.f32 %v876, %v963
        %v974 = vadd.f32 %v877, %v964
        %v975 = vxor.u32 %v965, 2147483648
        %v976 = vxor.u32 %v966, 2147483648
        %v977 = vxor.u32 %v967, 2147483648
        %v978 = vxor.u32 %v968, 2147483648
        %v979 = vxor.u32 %v969, 2147483648
        %v980 = vxor.u32 %v970, 2147483648
        %v981 = vxor.u32 %v971, 2147483648
        %v982 = vxor.u32 %v972, 2147483648
        %v983 = vxor.u32 %v973, 2147483648
        %v984 = vxor.u32 %v974, 2147483648
        %v985 = vmul.f32 %v975, 1.442695
        %v986 = vpow.pop %v985
        %v987 = vmul.f32 %v976, 1.442695
        %v988 = vpow.pop %v987
        %v989 = vmul.f32 %v977, 1.442695
        %v990 = vpow.pop %v989
        %v991 = vmul.f32 %v978, 1.442695
        %v992 = vpow.pop %v991
        %v993 = vmul.f32 %v979, 1.442695
        %v994 = vpow.pop %v993
        %v995 = vmul.f32 %v980, 1.442695
        %v996 = vpow.pop %v995
        %v997 = vmul.f32 %v981, 1.442695
        %v998 = vpow.pop %v997
        %v999 = vmul.f32 %v982, 1.442695
        %v1000 = vpow.pop %v999
        %v1001 = vmul.f32 %v983, 1.442695
        %v1002 = vpow.pop %v1001
        %v1003 = vmul.f32 %v984, 1.442695
        %v1004 = vpow.pop %v1003
        %v1005 = vadd.f32 %v986, 1.0
        %v1006 = vadd.f32 %v988, 1.0
        %v1007 = vadd.f32 %v990, 1.0
        %v1008 = vadd.f32 %v992, 1.0
        %v1009 = vadd.f32 %v994, 1.0
        %v1010 = vadd.f32 %v996, 1.0
        %v1011 = vadd.f32 %v998, 1.0
        %v1012 = vadd.f32 %v1000, 1.0
        %v1013 = vadd.f32 %v1002, 1.0
        %v1014 = vadd.f32 %v1004, 1.0
        %v1015 = vrcp.pop %v1005
        %v1016 = vmul.f32 1.0, %v1015
        %v1017 = vrcp.pop %v1006
        %v1018 = vmul.f32 1.0, %v1017
        %v1019 = vrcp.pop %v1007
        %v1020 = vmul.f32 1.0, %v1019
        %v1021 = vrcp.pop %v1008
        %v1022 = vmul.f32 1.0, %v1021
        %v1023 = vrcp.pop %v1009
        %v1024 = vmul.f32 1.0, %v1023
        %v1025 = vrcp.pop %v1010
        %v1026 = vmul.f32 1.0, %v1025
        %v1027 = vrcp.pop %v1011
        %v1028 = vmul.f32 1.0, %v1027
        %v1029 = vrcp.pop %v1012
        %v1030 = vmul.f32 1.0, %v1029
        %v1031 = vrcp.pop %v1013
        %v1032 = vmul.f32 1.0, %v1031
        %v1033 = vrcp.pop %v1014
        %v1034 = vmul.f32 1.0, %v1033
        %v1035 = vmul.f32 %v965, %v1016
        %v1036 = vmul.f32 %v966, %v1018
        %v1037 = vmul.f32 %v967, %v1020
        %v1038 = vmul.f32 %v968, %v1022
        %v1039 = vmul.f32 %v969, %v1024
        %v1040 = vmul.f32 %v970, %v1026
        %v1041 = vmul.f32 %v971, %v1028
        %v1042 = vmul.f32 %v972, %v1030
        %v1043 = vmul.f32 %v973, %v1032
        %v1044 = vmul.f32 %v974, %v1034
        %v1045 = vmul.f32 %v498, %v371
        %v1046 = vmul.f32 %v505, %v371
        %v1047 = vmul.f32 %v512, %v371
        %v1048 = vmul.f32 %v519, %v371
        %v1049 = vmul.f32 %v526, %v371
        %v1050 = vmul.f32 %v533, %v371
        %v1051 = vmul.f32 %v540, %v371
        %v1052 = vmul.f32 %v547, %v371
        %v1053 = vmul.f32 %v554, %v371
        %v1054 = vadd.f32 %v294, %v1045
        %v1055 = vadd.f32 %v294, %v1046
        %v1056 = vadd.f32 %v294, %v1047
        %v1057 = vadd.f32 %v294, %v1048
        %v1058 = vadd.f32 %v294, %v1049
        %v1059 = vadd.f32 %v294, %v1050
        %v1060 = vadd.f32 %v294, %v1051
        %v1061 = vadd.f32 %v294, %v1052
        %v1062 = vadd.f32 %v294, %v1053
        %v1063 = vmul.f32 %v595, %v468
        %v1064 = vmul.f32 %v602, %v468
        %v1065 = vmul.f32 %v609, %v468
        %v1066 = vmul.f32 %v616, %v468
        %v1067 = vmul.f32 %v623, %v468
        %v1068 = vmul.f32 %v630, %v468
        %v1069 = vmul.f32 %v637, %v468
        %v1070 = vmul.f32 %v644, %v468
        %v1071 = vmul.f32 %v651, %v468
        %v1072 = vadd.f32 %v1054, %v1063
        %v1073 = vadd.f32 %v1055, %v1064
        %v1074 = vadd.f32 %v1056, %v1065
        %v1075 = vadd.f32 %v1057, %v1066
        %v1076 = vadd.f32 %v1058, %v1067
        %v1077 = vadd.f32 %v1059, %v1068
        %v1078 = vadd.f32 %v1060, %v1069
        %v1079 = vadd.f32 %v1061, %v1070
        %v1080 = vadd.f32 %v1062, %v1071
        %v1081 = vmul.f32 %v693, %v565
        %v1082 = vmul.f32 %v700, %v565
        %v1083 = vmul.f32 %v707, %v565
        %v1084 = vmul.f32 %v714, %v565
        %v1085 = vmul.f32 %v721, %v565
        %v1086 = vmul.f32 %v728, %v565
        %v1087 = vmul.f32 %v735, %v565
        %v1088 = vmul.f32 %v742, %v565
        %v1089 = vmul.f32 %v749, %v565
        %v1090 = vadd.f32 %v1072, %v1081
        %v1091 = vadd.f32 %v1073, %v1082
        %v1092 = vadd.f32 %v1074, %v1083
        %v1093 = vadd.f32 %v1075, %v1084
        %v1094 = vadd.f32 %v1076, %v1085
        %v1095 = vadd.f32 %v1077, %v1086
        %v1096 = vadd.f32 %v1078, %v1087
        %v1097 = vadd.f32 %v1079, %v1088
        %v1098 = vadd.f32 %v1080, %v1089
        %v1099 = vmul.f32 %v790, %v662
        %v1100 = vmul.f32 %v797, %v662
        %v1101 = vmul.f32 %v804, %v662
        %v1102 = vmul.f32 %v811, %v662
        %v1103 = vmul.f32 %v818, %v662
        %v1104 = vmul.f32 %v825, %v662
        %v1105 = vmul.f32 %v832, %v662
        %v1106 = vmul.f32 %v839, %v662
        %v1107 = vmul.f32 %v846, %v662
        %v1108 = vadd.f32 %v1090, %v1099
        %v1109 = vadd.f32 %v1091, %v1100
        %v1110 = vadd.f32 %v1092, %v1101
        %v1111 = vadd.f32 %v1093, %v1102
        %v1112 = vadd.f32 %v1094, %v1103
        %v1113 = vadd.f32 %v1095, %v1104
        %v1114 = vadd.f32 %v1096, %v1105
        %v1115 = vadd.f32 %v1097, %v1106
        %v1116 = vadd.f32 %v1098, %v1107
        %v1117 = vmul.f32 %v887, %v760
        %v1118 = vmul.f32 %v894, %v760
        %v1119 = vmul.f32 %v901, %v760
        %v1120 = vmul.f32 %v908, %v760
        %v1121 = vmul.f32 %v915, %v760
        %v1122 = vmul.f32 %v922, %v760
        %v1123 = vmul.f32 %v929, %v760
        %v1124 = vmul.f32 %v936, %v760
        %v1125 = vmul.f32 %v943, %v760
        %v1126 = vadd.f32 %v1108, %v1117
        %v1127 = vadd.f32 %v1109, %v1118
        %v1128 = vadd.f32 %v1110, %v1119
        %v1129 = vadd.f32 %v1111, %v1120
        %v1130 = vadd.f32 %v1112, %v1121
        %v1131 = vadd.f32 %v1113, %v1122
        %v1132 = vadd.f32 %v1114, %v1123
        %v1133 = vadd.f32 %v1115, %v1124
        %v1134 = vadd.f32 %v1116, %v1125
        %s1135 = scalar_lea.vmem %s3, %s683
        %v1136 = vld [vmem:[%s1135] sm:$0xff]
        %v1137 = vld [vmem:[%s1135 + $0x8] sm:$0x3]
        %v1138 = vlaneseq
        %v1139 = vshrl.u32 %v1138, 7
        %v1140 = vsub.s32 0, %v1139
        %v1141 = vrot.slane %v1136, %v1140
        %1143 = vbcast.lane.b32.xlu0 %v1141, 256
        %v1144 = vpop.permute.xlu0 %1143
        %v1145 = vlaneseq
        %v1146 = vshrl.u32 %v1145, 7
        %v1147 = vsub.s32 1, %v1146
        %v1148 = vrot.slane %v1136, %v1147
        %1150 = vbcast.lane.b32.xlu0 %v1148, 256
        %v1151 = vpop.permute.xlu0 %1150
        %v1152 = vlaneseq
        %v1153 = vshrl.u32 %v1152, 7
        %v1154 = vsub.s32 2, %v1153
        %v1155 = vrot.slane %v1136, %v1154
        %1157 = vbcast.lane.b32.xlu0 %v1155, 256
        %v1158 = vpop.permute.xlu0 %1157
        %v1159 = vlaneseq
        %v1160 = vshrl.u32 %v1159, 7
        %v1161 = vsub.s32 3, %v1160
        %v1162 = vrot.slane %v1136, %v1161
        %1164 = vbcast.lane.b32.xlu0 %v1162, 256
        %v1165 = vpop.permute.xlu0 %1164
        %v1166 = vlaneseq
        %v1167 = vshrl.u32 %v1166, 7
        %v1168 = vsub.s32 4, %v1167
        %v1169 = vrot.slane %v1136, %v1168
        %1171 = vbcast.lane.b32.xlu0 %v1169, 256
        %v1172 = vpop.permute.xlu0 %1171
        %v1173 = vlaneseq
        %v1174 = vshrl.u32 %v1173, 7
        %v1175 = vsub.s32 5, %v1174
        %v1176 = vrot.slane %v1136, %v1175
        %1178 = vbcast.lane.b32.xlu0 %v1176, 256
        %v1179 = vpop.permute.xlu0 %1178
        %v1180 = vlaneseq
        %v1181 = vshrl.u32 %v1180, 7
        %v1182 = vsub.s32 6, %v1181
        %v1183 = vrot.slane %v1136, %v1182
        %1185 = vbcast.lane.b32.xlu0 %v1183, 256
        %v1186 = vpop.permute.xlu0 %1185
        %v1187 = vlaneseq
        %v1188 = vshrl.u32 %v1187, 7
        %v1189 = vsub.s32 7, %v1188
        %v1190 = vrot.slane %v1136, %v1189
        %1192 = vbcast.lane.b32.xlu0 %v1190, 256
        %v1193 = vpop.permute.xlu0 %1192
        %v1194 = vlaneseq
        %v1195 = vshrl.u32 %v1194, 7
        %v1196 = vsub.s32 0, %v1195
        %v1197 = vrot.slane %v1137, %v1196
        %1199 = vbcast.lane.b32.xlu0 %v1197, 256
        %v1200 = vpop.permute.xlu0 %1199
        %v1201 = vmul.f32 %v1144, %v857
        %v1202 = vmul.f32 %v1151, %v857
        %v1203 = vmul.f32 %v1158, %v857
        %v1204 = vmul.f32 %v1165, %v857
        %v1205 = vmul.f32 %v1172, %v857
        %v1206 = vmul.f32 %v1179, %v857
        %v1207 = vmul.f32 %v1186, %v857
        %v1208 = vmul.f32 %v1193, %v857
        %v1209 = vmul.f32 %v1200, %v857
        %v1210 = vadd.f32 %v1126, %v1201
        %v1211 = vadd.f32 %v1127, %v1202
        %v1212 = vadd.f32 %v1128, %v1203
        %v1213 = vadd.f32 %v1129, %v1204
        %v1214 = vadd.f32 %v1130, %v1205
        %v1215 = vadd.f32 %v1131, %v1206
        %v1216 = vadd.f32 %v1132, %v1207
        %v1217 = vadd.f32 %v1133, %v1208
        %v1218 = vadd.f32 %v1134, %v1209
        %s1219 = sadd.s32 %s285, 2
        %s1220 = scalar_lea.vmem %s0, %s1219
        %v1221 = vld [vmem:[%s1220] sm:$0xff]
        %v1222 = vld [vmem:[%s1220 + $0x8] sm:$0x3]
        %v1223 = vlaneseq
        %v1224 = vshrl.u32 %v1223, 7
        %v1225 = vsub.s32 0, %v1224
        %v1226 = vrot.slane %v1221, %v1225
        %1228 = vbcast.lane.b32.xlu0 %v1226, 256
        %v1229 = vpop.permute.xlu0 %1228
        %v1230 = vlaneseq
        %v1231 = vshrl.u32 %v1230, 7
        %v1232 = vsub.s32 1, %v1231
        %v1233 = vrot.slane %v1221, %v1232
        %1235 = vbcast.lane.b32.xlu0 %v1233, 256
        %v1236 = vpop.permute.xlu0 %1235
        %v1237 = vlaneseq
        %v1238 = vshrl.u32 %v1237, 7
        %v1239 = vsub.s32 2, %v1238
        %v1240 = vrot.slane %v1221, %v1239
        %1242 = vbcast.lane.b32.xlu0 %v1240, 256
        %v1243 = vpop.permute.xlu0 %1242
        %v1244 = vlaneseq
        %v1245 = vshrl.u32 %v1244, 7
        %v1246 = vsub.s32 3, %v1245
        %v1247 = vrot.slane %v1221, %v1246
        %1249 = vbcast.lane.b32.xlu0 %v1247, 256
        %v1250 = vpop.permute.xlu0 %1249
        %v1251 = vlaneseq
        %v1252 = vshrl.u32 %v1251, 7
        %v1253 = vsub.s32 4, %v1252
        %v1254 = vrot.slane %v1221, %v1253
        %1256 = vbcast.lane.b32.xlu0 %v1254, 256
        %v1257 = vpop.permute.xlu0 %1256
        %v1258 = vlaneseq
        %v1259 = vshrl.u32 %v1258, 7
        %v1260 = vsub.s32 5, %v1259
        %v1261 = vrot.slane %v1221, %v1260
        %1263 = vbcast.lane.b32.xlu0 %v1261, 256
        %v1264 = vpop.permute.xlu0 %1263
        %v1265 = vlaneseq
        %v1266 = vshrl.u32 %v1265, 7
        %v1267 = vsub.s32 6, %v1266
        %v1268 = vrot.slane %v1221, %v1267
        %1270 = vbcast.lane.b32.xlu0 %v1268, 256
        %v1271 = vpop.permute.xlu0 %1270
        %v1272 = vlaneseq
        %v1273 = vshrl.u32 %v1272, 7
        %v1274 = vsub.s32 7, %v1273
        %v1275 = vrot.slane %v1221, %v1274
        %1277 = vbcast.lane.b32.xlu0 %v1275, 256
        %v1278 = vpop.permute.xlu0 %1277
        %v1279 = vlaneseq
        %v1280 = vshrl.u32 %v1279, 7
        %v1281 = vsub.s32 0, %v1280
        %v1282 = vrot.slane %v1222, %v1281
        %1284 = vbcast.lane.b32.xlu0 %v1282, 256
        %v1285 = vpop.permute.xlu0 %1284
        %v1286 = vmul.f32 %v1229, %v954
        %v1287 = vmul.f32 %v1236, %v954
        %v1288 = vmul.f32 %v1243, %v954
        %v1289 = vmul.f32 %v1250, %v954
        %v1290 = vmul.f32 %v1257, %v954
        %v1291 = vmul.f32 %v1264, %v954
        %v1292 = vmul.f32 %v1271, %v954
        %v1293 = vmul.f32 %v1278, %v954
        %v1294 = vmul.f32 %v1285, %v954
        %v1295 = vadd.f32 %v1210, %v1286
        %v1296 = vadd.f32 %v1211, %v1287
        %v1297 = vadd.f32 %v1212, %v1288
        %v1298 = vadd.f32 %v1213, %v1289
        %v1299 = vadd.f32 %v1214, %v1290
        %v1300 = vadd.f32 %v1215, %v1291
        %v1301 = vadd.f32 %v1216, %v1292
        %v1302 = vadd.f32 %v1217, %v1293
        %v1303 = vadd.f32 %v1218, %v1294
        %v1304 = vxor.u32 %v1295, 2147483648
        %v1305 = vxor.u32 %v1296, 2147483648
        %v1306 = vxor.u32 %v1297, 2147483648
        %v1307 = vxor.u32 %v1298, 2147483648
        %v1308 = vxor.u32 %v1299, 2147483648
        %v1309 = vxor.u32 %v1300, 2147483648
        %v1310 = vxor.u32 %v1301, 2147483648
        %v1311 = vxor.u32 %v1302, 2147483648
        %v1312 = vxor.u32 %v1303, 2147483648
        %v1313 = vmul.f32 %v1304, 1.442695
        %v1314 = vpow.pop %v1313
        %v1315 = vmul.f32 %v1305, 1.442695
        %v1316 = vpow.pop %v1315
        %v1317 = vmul.f32 %v1306, 1.442695
        %v1318 = vpow.pop %v1317
        %v1319 = vmul.f32 %v1307, 1.442695
        %v1320 = vpow.pop %v1319
        %v1321 = vmul.f32 %v1308, 1.442695
        %v1322 = vpow.pop %v1321
        %v1323 = vmul.f32 %v1309, 1.442695
        %v1324 = vpow.pop %v1323
        %v1325 = vmul.f32 %v1310, 1.442695
        %v1326 = vpow.pop %v1325
        %v1327 = vmul.f32 %v1311, 1.442695
        %v1328 = vpow.pop %v1327
        %v1329 = vmul.f32 %v1312, 1.442695
        %v1330 = vpow.pop %v1329
        %v1331 = vadd.f32 %v1314, 1.0
        %v1332 = vadd.f32 %v1316, 1.0
        %v1333 = vadd.f32 %v1318, 1.0
        %v1334 = vadd.f32 %v1320, 1.0
        %v1335 = vadd.f32 %v1322, 1.0
        %v1336 = vadd.f32 %v1324, 1.0
        %v1337 = vadd.f32 %v1326, 1.0
        %v1338 = vadd.f32 %v1328, 1.0
        %v1339 = vadd.f32 %v1330, 1.0
        %v1340 = vrcp.pop %v1331
        %v1341 = vmul.f32 1.0, %v1340
        %v1342 = vrcp.pop %v1332
        %v1343 = vmul.f32 1.0, %v1342
        %v1344 = vrcp.pop %v1333
        %v1345 = vmul.f32 1.0, %v1344
        %v1346 = vrcp.pop %v1334
        %v1347 = vmul.f32 1.0, %v1346
        %v1348 = vrcp.pop %v1335
        %v1349 = vmul.f32 1.0, %v1348
        %v1350 = vrcp.pop %v1336
        %v1351 = vmul.f32 1.0, %v1350
        %v1352 = vrcp.pop %v1337
        %v1353 = vmul.f32 1.0, %v1352
        %v1354 = vrcp.pop %v1338
        %v1355 = vmul.f32 1.0, %v1354
        %v1356 = vrcp.pop %v1339
        %v1357 = vmul.f32 1.0, %v1356
        %v1358 = vmul.f32 %v1295, %v1341
        %v1359 = vmul.f32 %v1296, %v1343
        %v1360 = vmul.f32 %v1297, %v1345
        %v1361 = vmul.f32 %v1298, %v1347
        %v1362 = vmul.f32 %v1299, %v1349
        %v1363 = vmul.f32 %v1300, %v1351
        %v1364 = vmul.f32 %v1301, %v1353
        %v1365 = vmul.f32 %v1302, %v1355
        %v1366 = vmul.f32 %v1303, %v1357
        %v1367 = vld [vmem:[%s6] sm:$0xff]
        %v1368 = vld [vmem:[%s6 + $0x8] sm:$0xff]
        %v1369 = vld [vmem:[%s6 + $0x10] sm:$0xff]
        %v1370 = vld [vmem:[%s6 + $0x18] sm:$0xff]
        %v1371 = vld [vmem:[%s6 + $0x20] sm:$0xff]
        %v1372 = vld [vmem:[%s6 + $0x28] sm:$0xff]
        %v1373 = vld [vmem:[%s6 + $0x30] sm:$0xff]
        %v1374 = vld [vmem:[%s6 + $0x38] sm:$0xff]
        %v1375 = vld [vmem:[%s6 + $0x40] sm:$0xff]
        %v1376 = vld [vmem:[%s6 + $0x48] sm:$0xff]
        %v1377 = vld [vmem:[%s7] sm:$0x1]
        %v1386 = vcombine.low %v1358, %v1359
        %v1387 = vcombine.low %v1360, %v1361
        %v1389 = vunpack.c.l.s4 1983009808
        %v1390 = vunpack.c.0.s8 %v1389
        %v1391 = vlaneseq
        %v1392 = vshrl.u32 %v1391, 7
        %v1393 = vsub.s32 %v1390, %v1392
        %v1394 = vrot.slane %v1386, %v1393
        %v1396 = vunpack.c.l.s4 1983009808
        %v1397 = vunpack.c.0.s8 %v1396
        %v1398 = vlaneseq
        %v1399 = vshrl.u32 %v1398, 7
        %v1400 = vsub.s32 %v1397, %v1399
        %v1401 = vrot.slane %v1387, %v1400
        %v1402 = vcombine.low %v1394, %v1401
        %v1403 = vcombine.low %v1362, %v1363
        %v1404 = vcombine.low %v1364, %v1365
        %v1406 = vunpack.c.l.s4 1983009808
        %v1407 = vunpack.c.0.s8 %v1406
        %v1408 = vlaneseq
        %v1409 = vshrl.u32 %v1408, 7
        %v1410 = vsub.s32 %v1407, %v1409
        %v1411 = vrot.slane %v1403, %v1410
        %v1413 = vunpack.c.l.s4 1983009808
        %v1414 = vunpack.c.0.s8 %v1413
        %v1415 = vlaneseq
        %v1416 = vshrl.u32 %v1415, 7
        %v1417 = vsub.s32 %v1414, %v1416
        %v1418 = vrot.slane %v1404, %v1417
        %v1419 = vcombine.low %v1411, %v1418
        %vm1420 = vcmask 130048
        %v1421 = vsel %vm1420, %v1402, 0
        %v1423 = vsel %vm1420, %v1419, 0
        %1425 = vmatprep.subr.mxu0 0.0
        %1426 = vmatpush1.msra.mxu0 0.0
        %1427 = vmatprep.subr.mxu0 0.0
        %1428 = vmatpush1.msra.mxu0 0.0
        %1429 = vmatprep.subr.mxu0 0.0
        %1430 = vmatpush1.msra.mxu0 0.0
        %1431 = vmatprep.subr.mxu0 0.0
        %1432 = vmatpush1.msra.mxu0 0.0
        %1433 = vmatprep.subr.mxu0 0.0
        %1434 = vmatpush1.msra.mxu0 0.0
        %1435 = vmatprep.subr.mxu0 0.0
        %1436 = vmatpush1.msra.mxu0 0.0
        %1437 = vmatprep.subr.mxu0 0.0
        %1438 = vmatpush1.msra.mxu0 0.0
        %1439 = vmatprep.subr.mxu0 0.0
        %1440 = vmatpush1.msra.mxu0 0.0
        %1441 = vmatprep.subr.mxu0 0.0
        %1442 = vmatpush1.msra.mxu0 0.0
        %1443 = vmatprep.subr.mxu0 0.0
        %1444 = vmatpush1.msra.mxu0 0.0
        %1445 = vmatprep.subr.mxu0 0.0
        %1446 = vmatpush1.msra.mxu0 0.0
        %1447 = vmatprep.subr.mxu0 0.0
        %1448 = vmatpush1.msra.mxu0 0.0
        %1449 = vmatprep.subr.mxu0 0.0
        %1450 = vmatpush1.msra.mxu0 0.0
        %1451 = vmatprep.subr.mxu0 0.0
        %1452 = vmatpush1.msra.mxu0 0.0
        %1453 = vmatprep.subr.mxu0 0.0
        %1454 = vmatpush1.msra.mxu0 %v1370
        %1455 = vmatprep.subr.mxu0 0.0
        %1456 = vmatpush1.msra.mxu0 %v1369
        %1457 = vmatprep.subr.mxu0 0.0
        %1458 = vmatpush2.msra.mxu0 0.0
        %1459 = vmatprep.subr.mxu0 0.0
        %1460 = vmatpush2.msra.mxu0 0.0
        %1461 = vmatprep.subr.mxu0 0.0
        %1462 = vmatpush2.msra.mxu0 0.0
        %1463 = vmatprep.subr.mxu0 0.0
        %1464 = vmatpush2.msra.mxu0 0.0
        %1465 = vmatprep.subr.mxu0 0.0
        %1466 = vmatpush2.msra.mxu0 0.0
        %1467 = vmatprep.subr.mxu0 0.0
        %1468 = vmatpush2.msra.mxu0 0.0
        %1469 = vmatprep.subr.mxu0 0.0
        %1470 = vmatpush2.msra.mxu0 0.0
        %1471 = vmatprep.subr.mxu0 0.0
        %1472 = vmatpush2.msra.mxu0 0.0
        %1473 = vmatprep.subr.mxu0 0.0
        %1474 = vmatpush2.msra.mxu0 0.0
        %1475 = vmatprep.subr.mxu0 0.0
        %1476 = vmatpush2.msra.mxu0 0.0
        %1477 = vmatprep.subr.mxu0 0.0
        %1478 = vmatpush2.msra.mxu0 0.0
        %1479 = vmatprep.subr.mxu0 0.0
        %1480 = vmatpush2.msra.mxu0 0.0
        %1481 = vmatprep.subr.mxu0 0.0
        %1482 = vmatpush2.msra.mxu0 0.0
        %1483 = vmatprep.subr.mxu0 0.0
        %1484 = vmatpush2.msra.mxu0 0.0
        %1485 = vmatprep.subr.mxu0 0.0
        %1486 = vmatpush2.msra.mxu0 0.0
        %1487 = vmatprep.subr.mxu0 0.0
        %1488 = vmatpush2.msra.mxu0 0.0
        %1489 = vmatprep.mubr.f32.mxu0 0.0
        %1490 = vmatmul.mubr.f32.gmra.mxu0 %v1421
        %v1491 = vpop.f32.mrf.mxu0
        %v1492 = vadd.f32 0.0, %v1491
        %v1493 = vpop.f32.mrf.mxu0
        %1494 = vmatprep.mubr.f32.mxu0 0.0
        %1495 = vmatmul.mubr.f32.gmra.mxu0 %v1423
        %v1496 = vpop.f32.mrf.mxu0
        %v1497 = vadd.f32 0.0, %v1496
        %v1498 = vpop.f32.mrf.mxu0
        %1499 = vdwg.mxu0
        %v1508 = vcombine.low %v1035, %v1036
        %v1509 = vcombine.low %v1037, %v1038
        %v1511 = vunpack.c.l.s4 1983009808
        %v1512 = vunpack.c.0.s8 %v1511
        %v1513 = vlaneseq
        %v1514 = vshrl.u32 %v1513, 7
        %v1515 = vsub.s32 %v1512, %v1514
        %v1516 = vrot.slane %v1508, %v1515
        %v1518 = vunpack.c.l.s4 1983009808
        %v1519 = vunpack.c.0.s8 %v1518
        %v1520 = vlaneseq
        %v1521 = vshrl.u32 %v1520, 7
        %v1522 = vsub.s32 %v1519, %v1521
        %v1523 = vrot.slane %v1509, %v1522
        %v1524 = vcombine.low %v1516, %v1523
        %v1525 = vcombine.low %v1039, %v1040
        %v1526 = vcombine.low %v1041, %v1042
        %v1528 = vunpack.c.l.s4 1983009808
        %v1529 = vunpack.c.0.s8 %v1528
        %v1530 = vlaneseq
        %v1531 = vshrl.u32 %v1530, 7
        %v1532 = vsub.s32 %v1529, %v1531
        %v1533 = vrot.slane %v1525, %v1532
        %v1535 = vunpack.c.l.s4 1983009808
        %v1536 = vunpack.c.0.s8 %v1535
        %v1537 = vlaneseq
        %v1538 = vshrl.u32 %v1537, 7
        %v1539 = vsub.s32 %v1536, %v1538
        %v1540 = vrot.slane %v1526, %v1539
        %v1541 = vcombine.low %v1533, %v1540
        %v1542 = vsel %vm1420, %v1524, 0
        %v1544 = vsel %vm1420, %v1541, 0
        %1546 = vmatprep.subr.mxu0 0.0
        %1547 = vmatpush1.msra.mxu0 0.0
        %1548 = vmatprep.subr.mxu0 0.0
        %1549 = vmatpush1.msra.mxu0 0.0
        %1550 = vmatprep.subr.mxu0 0.0
        %1551 = vmatpush1.msra.mxu0 0.0
        %1552 = vmatprep.subr.mxu0 0.0
        %1553 = vmatpush1.msra.mxu0 0.0
        %1554 = vmatprep.subr.mxu0 0.0
        %1555 = vmatpush1.msra.mxu0 0.0
        %1556 = vmatprep.subr.mxu0 0.0
        %1557 = vmatpush1.msra.mxu0 0.0
        %1558 = vmatprep.subr.mxu0 0.0
        %1559 = vmatpush1.msra.mxu0 0.0
        %1560 = vmatprep.subr.mxu0 0.0
        %1561 = vmatpush1.msra.mxu0 0.0
        %1562 = vmatprep.subr.mxu0 0.0
        %1563 = vmatpush1.msra.mxu0 0.0
        %1564 = vmatprep.subr.mxu0 0.0
        %1565 = vmatpush1.msra.mxu0 0.0
        %1566 = vmatprep.subr.mxu0 0.0
        %1567 = vmatpush1.msra.mxu0 0.0
        %1568 = vmatprep.subr.mxu0 0.0
        %1569 = vmatpush1.msra.mxu0 0.0
        %1570 = vmatprep.subr.mxu0 0.0
        %1571 = vmatpush1.msra.mxu0 0.0
        %1572 = vmatprep.subr.mxu0 0.0
        %1573 = vmatpush1.msra.mxu0 0.0
        %1574 = vmatprep.subr.mxu0 0.0
        %1575 = vmatpush1.msra.mxu0 %v1368
        %1576 = vmatprep.subr.mxu0 0.0
        %1577 = vmatpush1.msra.mxu0 %v1367
        %1578 = vmatprep.subr.mxu0 0.0
        %1579 = vmatpush2.msra.mxu0 0.0
        %1580 = vmatprep.subr.mxu0 0.0
        %1581 = vmatpush2.msra.mxu0 0.0
        %1582 = vmatprep.subr.mxu0 0.0
        %1583 = vmatpush2.msra.mxu0 0.0
        %1584 = vmatprep.subr.mxu0 0.0
        %1585 = vmatpush2.msra.mxu0 0.0
        %1586 = vmatprep.subr.mxu0 0.0
        %1587 = vmatpush2.msra.mxu0 0.0
        %1588 = vmatprep.subr.mxu0 0.0
        %1589 = vmatpush2.msra.mxu0 0.0
        %1590 = vmatprep.subr.mxu0 0.0
        %1591 = vmatpush2.msra.mxu0 0.0
        %1592 = vmatprep.subr.mxu0 0.0
        %1593 = vmatpush2.msra.mxu0 0.0
        %1594 = vmatprep.subr.mxu0 0.0
        %1595 = vmatpush2.msra.mxu0 0.0
        %1596 = vmatprep.subr.mxu0 0.0
        %1597 = vmatpush2.msra.mxu0 0.0
        %1598 = vmatprep.subr.mxu0 0.0
        %1599 = vmatpush2.msra.mxu0 0.0
        %1600 = vmatprep.subr.mxu0 0.0
        %1601 = vmatpush2.msra.mxu0 0.0
        %1602 = vmatprep.subr.mxu0 0.0
        %1603 = vmatpush2.msra.mxu0 0.0
        %1604 = vmatprep.subr.mxu0 0.0
        %1605 = vmatpush2.msra.mxu0 0.0
        %1606 = vmatprep.subr.mxu0 0.0
        %1607 = vmatpush2.msra.mxu0 0.0
        %1608 = vmatprep.subr.mxu0 0.0
        %1609 = vmatpush2.msra.mxu0 0.0
        %1610 = vmatprep.mubr.f32.mxu0 0.0
        %1611 = vmatmul.mubr.f32.gmra.mxu0 %v1542
        %v1612 = vpop.f32.mrf.mxu0
        %v1613 = vadd.f32 %v1492, %v1612
        %v1614 = vpop.f32.mrf.mxu0
        %1615 = vmatprep.mubr.f32.mxu0 0.0
        %1616 = vmatmul.mubr.f32.gmra.mxu0 %v1544
        %v1617 = vpop.f32.mrf.mxu0
        %v1618 = vadd.f32 %v1497, %v1617
        %v1619 = vpop.f32.mrf.mxu0
        %1620 = vdwg.mxu0
        %v1623 = vcombine.high %v1613, %v1613
        %v1625 = vunpack.c.l.s4 1983009808
        %v1626 = vunpack.c.0.s8 %v1625
        %v1627 = vlaneseq
        %v1628 = vshrl.u32 %v1627, 7
        %v1629 = vsub.s32 %v1626, %v1628
        %v1630 = vrot.slane %v1613, %v1629
        %v1632 = vunpack.c.l.s4 1983009808
        %v1633 = vunpack.c.0.s8 %v1632
        %v1634 = vlaneseq
        %v1635 = vshrl.u32 %v1634, 7
        %v1636 = vsub.s32 %v1633, %v1635
        %v1637 = vrot.slane %v1623, %v1636
        %v1638 = vcombine.high %v1630, %v1630
        %v1639 = vcombine.high %v1637, %v1637
        %v1640 = vcombine.high %v1618, %v1618
        %v1642 = vunpack.c.l.s4 1983009808
        %v1643 = vunpack.c.0.s8 %v1642
        %v1644 = vlaneseq
        %v1645 = vshrl.u32 %v1644, 7
        %v1646 = vsub.s32 %v1643, %v1645
        %v1647 = vrot.slane %v1618, %v1646
        %v1649 = vunpack.c.l.s4 1983009808
        %v1650 = vunpack.c.0.s8 %v1649
        %v1651 = vlaneseq
        %v1652 = vshrl.u32 %v1651, 7
        %v1653 = vsub.s32 %v1650, %v1652
        %v1654 = vrot.slane %v1640, %v1653
        %v1655 = vcombine.high %v1647, %v1647
        %v1656 = vcombine.high %v1654, %v1654
        %v1666 = vcombine.low %v1036, %v1037
        %v1667 = vcombine.low %v1038, %v1039
        %v1669 = vunpack.c.l.s4 1983009808
        %v1670 = vunpack.c.0.s8 %v1669
        %v1671 = vlaneseq
        %v1672 = vshrl.u32 %v1671, 7
        %v1673 = vsub.s32 %v1670, %v1672
        %v1674 = vrot.slane %v1666, %v1673
        %v1676 = vunpack.c.l.s4 1983009808
        %v1677 = vunpack.c.0.s8 %v1676
        %v1678 = vlaneseq
        %v1679 = vshrl.u32 %v1678, 7
        %v1680 = vsub.s32 %v1677, %v1679
        %v1681 = vrot.slane %v1667, %v1680
        %v1682 = vcombine.low %v1674, %v1681
        %v1683 = vcombine.low %v1040, %v1041
        %v1684 = vcombine.low %v1042, %v1043
        %v1686 = vunpack.c.l.s4 1983009808
        %v1687 = vunpack.c.0.s8 %v1686
        %v1688 = vlaneseq
        %v1689 = vshrl.u32 %v1688, 7
        %v1690 = vsub.s32 %v1687, %v1689
        %v1691 = vrot.slane %v1683, %v1690
        %v1693 = vunpack.c.l.s4 1983009808
        %v1694 = vunpack.c.0.s8 %v1693
        %v1695 = vlaneseq
        %v1696 = vshrl.u32 %v1695, 7
        %v1697 = vsub.s32 %v1694, %v1696
        %v1698 = vrot.slane %v1684, %v1697
        %v1699 = vcombine.low %v1691, %v1698
        %v1700 = vsel %vm1420, %v1682, 0
        %v1702 = vsel %vm1420, %v1699, 0
        %1704 = vmatprep.subr.mxu0 0.0
        %1705 = vmatpush1.msra.mxu0 0.0
        %1706 = vmatprep.subr.mxu0 0.0
        %1707 = vmatpush1.msra.mxu0 0.0
        %1708 = vmatprep.subr.mxu0 0.0
        %1709 = vmatpush1.msra.mxu0 0.0
        %1710 = vmatprep.subr.mxu0 0.0
        %1711 = vmatpush1.msra.mxu0 0.0
        %1712 = vmatprep.subr.mxu0 0.0
        %1713 = vmatpush1.msra.mxu0 0.0
        %1714 = vmatprep.subr.mxu0 0.0
        %1715 = vmatpush1.msra.mxu0 0.0
        %1716 = vmatprep.subr.mxu0 0.0
        %1717 = vmatpush1.msra.mxu0 0.0
        %1718 = vmatprep.subr.mxu0 0.0
        %1719 = vmatpush1.msra.mxu0 0.0
        %1720 = vmatprep.subr.mxu0 0.0
        %1721 = vmatpush1.msra.mxu0 0.0
        %1722 = vmatprep.subr.mxu0 0.0
        %1723 = vmatpush1.msra.mxu0 0.0
        %1724 = vmatprep.subr.mxu0 0.0
        %1725 = vmatpush1.msra.mxu0 0.0
        %1726 = vmatprep.subr.mxu0 0.0
        %1727 = vmatpush1.msra.mxu0 0.0
        %1728 = vmatprep.subr.mxu0 0.0
        %1729 = vmatpush1.msra.mxu0 0.0
        %1730 = vmatprep.subr.mxu0 0.0
        %1731 = vmatpush1.msra.mxu0 0.0
        %1732 = vmatprep.subr.mxu0 0.0
        %1733 = vmatpush1.msra.mxu0 %v1372
        %1734 = vmatprep.subr.mxu0 0.0
        %1735 = vmatpush1.msra.mxu0 %v1371
        %1736 = vmatprep.subr.mxu0 0.0
        %1737 = vmatpush2.msra.mxu0 0.0
        %1738 = vmatprep.subr.mxu0 0.0
        %1739 = vmatpush2.msra.mxu0 0.0
        %1740 = vmatprep.subr.mxu0 0.0
        %1741 = vmatpush2.msra.mxu0 0.0
        %1742 = vmatprep.subr.mxu0 0.0
        %1743 = vmatpush2.msra.mxu0 0.0
        %1744 = vmatprep.subr.mxu0 0.0
        %1745 = vmatpush2.msra.mxu0 0.0
        %1746 = vmatprep.subr.mxu0 0.0
        %1747 = vmatpush2.msra.mxu0 0.0
        %1748 = vmatprep.subr.mxu0 0.0
        %1749 = vmatpush2.msra.mxu0 0.0
        %1750 = vmatprep.subr.mxu0 0.0
        %1751 = vmatpush2.msra.mxu0 0.0
        %1752 = vmatprep.subr.mxu0 0.0
        %1753 = vmatpush2.msra.mxu0 0.0
        %1754 = vmatprep.subr.mxu0 0.0
        %1755 = vmatpush2.msra.mxu0 0.0
        %1756 = vmatprep.subr.mxu0 0.0
        %1757 = vmatpush2.msra.mxu0 0.0
        %1758 = vmatprep.subr.mxu0 0.0
        %1759 = vmatpush2.msra.mxu0 0.0
        %1760 = vmatprep.subr.mxu0 0.0
        %1761 = vmatpush2.msra.mxu0 0.0
        %1762 = vmatprep.subr.mxu0 0.0
        %1763 = vmatpush2.msra.mxu0 0.0
        %1764 = vmatprep.subr.mxu0 0.0
        %1765 = vmatpush2.msra.mxu0 0.0
        %1766 = vmatprep.subr.mxu0 0.0
        %1767 = vmatpush2.msra.mxu0 0.0
        %1768 = vmatprep.mubr.f32.mxu0 0.0
        %1769 = vmatmul.mubr.f32.gmra.mxu0 %v1700
        %v1770 = vpop.f32.mrf.mxu0
        %v1771 = vadd.f32 0.0, %v1770
        %v1772 = vpop.f32.mrf.mxu0
        %1773 = vmatprep.mubr.f32.mxu0 0.0
        %1774 = vmatmul.mubr.f32.gmra.mxu0 %v1702
        %v1775 = vpop.f32.mrf.mxu0
        %v1776 = vadd.f32 0.0, %v1775
        %v1777 = vpop.f32.mrf.mxu0
        %1778 = vdwg.mxu0
        %v1781 = vcombine.high %v1771, %v1771
        %v1783 = vunpack.c.l.s4 1983009808
        %v1784 = vunpack.c.0.s8 %v1783
        %v1785 = vlaneseq
        %v1786 = vshrl.u32 %v1785, 7
        %v1787 = vsub.s32 %v1784, %v1786
        %v1788 = vrot.slane %v1771, %v1787
        %v1790 = vunpack.c.l.s4 1983009808
        %v1791 = vunpack.c.0.s8 %v1790
        %v1792 = vlaneseq
        %v1793 = vshrl.u32 %v1792, 7
        %v1794 = vsub.s32 %v1791, %v1793
        %v1795 = vrot.slane %v1781, %v1794
        %v1796 = vcombine.high %v1788, %v1788
        %v1797 = vcombine.high %v1795, %v1795
        %v1798 = vcombine.high %v1776, %v1776
        %v1800 = vunpack.c.l.s4 1983009808
        %v1801 = vunpack.c.0.s8 %v1800
        %v1802 = vlaneseq
        %v1803 = vshrl.u32 %v1802, 7
        %v1804 = vsub.s32 %v1801, %v1803
        %v1805 = vrot.slane %v1776, %v1804
        %v1807 = vunpack.c.l.s4 1983009808
        %v1808 = vunpack.c.0.s8 %v1807
        %v1809 = vlaneseq
        %v1810 = vshrl.u32 %v1809, 7
        %v1811 = vsub.s32 %v1808, %v1810
        %v1812 = vrot.slane %v1798, %v1811
        %v1813 = vcombine.high %v1805, %v1805
        %v1814 = vcombine.high %v1812, %v1812
        %v1823 = vadd.f32 %v1630, %v1788
        %v1824 = vadd.f32 %v1638, %v1796
        %v1825 = vadd.f32 %v1637, %v1795
        %v1826 = vadd.f32 %v1639, %v1797
        %v1827 = vadd.f32 %v1647, %v1805
        %v1828 = vadd.f32 %v1655, %v1813
        %v1829 = vadd.f32 %v1654, %v1812
        %v1830 = vadd.f32 %v1656, %v1814
        %v1832 = vcombine.low %v1359, %v1360
        %v1833 = vcombine.low %v1361, %v1362
        %v1835 = vunpack.c.l.s4 1983009808
        %v1836 = vunpack.c.0.s8 %v1835
        %v1837 = vlaneseq
        %v1838 = vshrl.u32 %v1837, 7
        %v1839 = vsub.s32 %v1836, %v1838
        %v1840 = vrot.slane %v1832, %v1839
        %v1842 = vunpack.c.l.s4 1983009808
        %v1843 = vunpack.c.0.s8 %v1842
        %v1844 = vlaneseq
        %v1845 = vshrl.u32 %v1844, 7
        %v1846 = vsub.s32 %v1843, %v1845
        %v1847 = vrot.slane %v1833, %v1846
        %v1848 = vcombine.low %v1840, %v1847
        %v1849 = vcombine.low %v1363, %v1364
        %v1850 = vcombine.low %v1365, %v1366
        %v1852 = vunpack.c.l.s4 1983009808
        %v1853 = vunpack.c.0.s8 %v1852
        %v1854 = vlaneseq
        %v1855 = vshrl.u32 %v1854, 7
        %v1856 = vsub.s32 %v1853, %v1855
        %v1857 = vrot.slane %v1849, %v1856
        %v1859 = vunpack.c.l.s4 1983009808
        %v1860 = vunpack.c.0.s8 %v1859
        %v1861 = vlaneseq
        %v1862 = vshrl.u32 %v1861, 7
        %v1863 = vsub.s32 %v1860, %v1862
        %v1864 = vrot.slane %v1850, %v1863
        %v1865 = vcombine.low %v1857, %v1864
        %v1866 = vsel %vm1420, %v1848, 0
        %v1868 = vsel %vm1420, %v1865, 0
        %1870 = vmatprep.subr.mxu0 0.0
        %1871 = vmatpush1.msra.mxu0 0.0
        %1872 = vmatprep.subr.mxu0 0.0
        %1873 = vmatpush1.msra.mxu0 0.0
        %1874 = vmatprep.subr.mxu0 0.0
        %1875 = vmatpush1.msra.mxu0 0.0
        %1876 = vmatprep.subr.mxu0 0.0
        %1877 = vmatpush1.msra.mxu0 0.0
        %1878 = vmatprep.subr.mxu0 0.0
        %1879 = vmatpush1.msra.mxu0 0.0
        %1880 = vmatprep.subr.mxu0 0.0
        %1881 = vmatpush1.msra.mxu0 0.0
        %1882 = vmatprep.subr.mxu0 0.0
        %1883 = vmatpush1.msra.mxu0 0.0
        %1884 = vmatprep.subr.mxu0 0.0
        %1885 = vmatpush1.msra.mxu0 0.0
        %1886 = vmatprep.subr.mxu0 0.0
        %1887 = vmatpush1.msra.mxu0 0.0
        %1888 = vmatprep.subr.mxu0 0.0
        %1889 = vmatpush1.msra.mxu0 0.0
        %1890 = vmatprep.subr.mxu0 0.0
        %1891 = vmatpush1.msra.mxu0 0.0
        %1892 = vmatprep.subr.mxu0 0.0
        %1893 = vmatpush1.msra.mxu0 0.0
        %1894 = vmatprep.subr.mxu0 0.0
        %1895 = vmatpush1.msra.mxu0 0.0
        %1896 = vmatprep.subr.mxu0 0.0
        %1897 = vmatpush1.msra.mxu0 0.0
        %1898 = vmatprep.subr.mxu0 0.0
        %1899 = vmatpush1.msra.mxu0 %v1374
        %1900 = vmatprep.subr.mxu0 0.0
        %1901 = vmatpush1.msra.mxu0 %v1373
        %1902 = vmatprep.subr.mxu0 0.0
        %1903 = vmatpush2.msra.mxu0 0.0
        %1904 = vmatprep.subr.mxu0 0.0
        %1905 = vmatpush2.msra.mxu0 0.0
        %1906 = vmatprep.subr.mxu0 0.0
        %1907 = vmatpush2.msra.mxu0 0.0
        %1908 = vmatprep.subr.mxu0 0.0
        %1909 = vmatpush2.msra.mxu0 0.0
        %1910 = vmatprep.subr.mxu0 0.0
        %1911 = vmatpush2.msra.mxu0 0.0
        %1912 = vmatprep.subr.mxu0 0.0
        %1913 = vmatpush2.msra.mxu0 0.0
        %1914 = vmatprep.subr.mxu0 0.0
        %1915 = vmatpush2.msra.mxu0 0.0
        %1916 = vmatprep.subr.mxu0 0.0
        %1917 = vmatpush2.msra.mxu0 0.0
        %1918 = vmatprep.subr.mxu0 0.0
        %1919 = vmatpush2.msra.mxu0 0.0
        %1920 = vmatprep.subr.mxu0 0.0
        %1921 = vmatpush2.msra.mxu0 0.0
        %1922 = vmatprep.subr.mxu0 0.0
        %1923 = vmatpush2.msra.mxu0 0.0
        %1924 = vmatprep.subr.mxu0 0.0
        %1925 = vmatpush2.msra.mxu0 0.0
        %1926 = vmatprep.subr.mxu0 0.0
        %1927 = vmatpush2.msra.mxu0 0.0
        %1928 = vmatprep.subr.mxu0 0.0
        %1929 = vmatpush2.msra.mxu0 0.0
        %1930 = vmatprep.subr.mxu0 0.0
        %1931 = vmatpush2.msra.mxu0 0.0
        %1932 = vmatprep.subr.mxu0 0.0
        %1933 = vmatpush2.msra.mxu0 0.0
        %1934 = vmatprep.mubr.f32.mxu0 0.0
        %1935 = vmatmul.mubr.f32.gmra.mxu0 %v1866
        %v1936 = vpop.f32.mrf.mxu0
        %v1937 = vadd.f32 0.0, %v1936
        %v1938 = vpop.f32.mrf.mxu0
        %1939 = vmatprep.mubr.f32.mxu0 0.0
        %1940 = vmatmul.mubr.f32.gmra.mxu0 %v1868
        %v1941 = vpop.f32.mrf.mxu0
        %v1942 = vadd.f32 0.0, %v1941
        %v1943 = vpop.f32.mrf.mxu0
        %1944 = vdwg.mxu0
        %v1947 = vcombine.high %v1937, %v1937
        %v1949 = vunpack.c.l.s4 1983009808
        %v1950 = vunpack.c.0.s8 %v1949
        %v1951 = vlaneseq
        %v1952 = vshrl.u32 %v1951, 7
        %v1953 = vsub.s32 %v1950, %v1952
        %v1954 = vrot.slane %v1937, %v1953
        %v1956 = vunpack.c.l.s4 1983009808
        %v1957 = vunpack.c.0.s8 %v1956
        %v1958 = vlaneseq
        %v1959 = vshrl.u32 %v1958, 7
        %v1960 = vsub.s32 %v1957, %v1959
        %v1961 = vrot.slane %v1947, %v1960
        %v1962 = vcombine.high %v1954, %v1954
        %v1963 = vcombine.high %v1961, %v1961
        %v1964 = vcombine.high %v1942, %v1942
        %v1966 = vunpack.c.l.s4 1983009808
        %v1967 = vunpack.c.0.s8 %v1966
        %v1968 = vlaneseq
        %v1969 = vshrl.u32 %v1968, 7
        %v1970 = vsub.s32 %v1967, %v1969
        %v1971 = vrot.slane %v1942, %v1970
        %v1973 = vunpack.c.l.s4 1983009808
        %v1974 = vunpack.c.0.s8 %v1973
        %v1975 = vlaneseq
        %v1976 = vshrl.u32 %v1975, 7
        %v1977 = vsub.s32 %v1974, %v1976
        %v1978 = vrot.slane %v1964, %v1977
        %v1979 = vcombine.high %v1971, %v1971
        %v1980 = vcombine.high %v1978, %v1978
        %v1989 = vadd.f32 %v1823, %v1954
        %v1990 = vadd.f32 %v1824, %v1962
        %v1991 = vadd.f32 %v1825, %v1961
        %v1992 = vadd.f32 %v1826, %v1963
        %v1993 = vadd.f32 %v1827, %v1971
        %v1994 = vadd.f32 %v1828, %v1979
        %v1995 = vadd.f32 %v1829, %v1978
        %v1996 = vadd.f32 %v1830, %v1980
        %v1998 = vcombine.low %v1523, %v1533
        %v1999 = vcombine.low %v1043, %v1044
        %v2001 = vunpack.c.l.s4 1983009808
        %v2002 = vunpack.c.0.s8 %v2001
        %v2003 = vlaneseq
        %v2004 = vshrl.u32 %v2003, 7
        %v2005 = vsub.s32 %v2002, %v2004
        %v2006 = vrot.slane %v1999, %v2005
        %v2007 = vcombine.low %v1540, %v2006
        %v2008 = vsel %vm1420, %v1998, 0
        %v2010 = vsel %vm1420, %v2007, 0
        %2012 = vmatprep.subr.mxu0 0.0
        %2013 = vmatpush1.msra.mxu0 0.0
        %2014 = vmatprep.subr.mxu0 0.0
        %2015 = vmatpush1.msra.mxu0 0.0
        %2016 = vmatprep.subr.mxu0 0.0
        %2017 = vmatpush1.msra.mxu0 0.0
        %2018 = vmatprep.subr.mxu0 0.0
        %2019 = vmatpush1.msra.mxu0 0.0
        %2020 = vmatprep.subr.mxu0 0.0
        %2021 = vmatpush1.msra.mxu0 0.0
        %2022 = vmatprep.subr.mxu0 0.0
        %2023 = vmatpush1.msra.mxu0 0.0
        %2024 = vmatprep.subr.mxu0 0.0
        %2025 = vmatpush1.msra.mxu0 0.0
        %2026 = vmatprep.subr.mxu0 0.0
        %2027 = vmatpush1.msra.mxu0 0.0
        %2028 = vmatprep.subr.mxu0 0.0
        %2029 = vmatpush1.msra.mxu0 0.0
        %2030 = vmatprep.subr.mxu0 0.0
        %2031 = vmatpush1.msra.mxu0 0.0
        %2032 = vmatprep.subr.mxu0 0.0
        %2033 = vmatpush1.msra.mxu0 0.0
        %2034 = vmatprep.subr.mxu0 0.0
        %2035 = vmatpush1.msra.mxu0 0.0
        %2036 = vmatprep.subr.mxu0 0.0
        %2037 = vmatpush1.msra.mxu0 0.0
        %2038 = vmatprep.subr.mxu0 0.0
        %2039 = vmatpush1.msra.mxu0 0.0
        %2040 = vmatprep.subr.mxu0 0.0
        %2041 = vmatpush1.msra.mxu0 %v1376
        %2042 = vmatprep.subr.mxu0 0.0
        %2043 = vmatpush1.msra.mxu0 %v1375
        %2044 = vmatprep.subr.mxu0 0.0
        %2045 = vmatpush2.msra.mxu0 0.0
        %2046 = vmatprep.subr.mxu0 0.0
        %2047 = vmatpush2.msra.mxu0 0.0
        %2048 = vmatprep.subr.mxu0 0.0
        %2049 = vmatpush2.msra.mxu0 0.0
        %2050 = vmatprep.subr.mxu0 0.0
        %2051 = vmatpush2.msra.mxu0 0.0
        %2052 = vmatprep.subr.mxu0 0.0
        %2053 = vmatpush2.msra.mxu0 0.0
        %2054 = vmatprep.subr.mxu0 0.0
        %2055 = vmatpush2.msra.mxu0 0.0
        %2056 = vmatprep.subr.mxu0 0.0
        %2057 = vmatpush2.msra.mxu0 0.0
        %2058 = vmatprep.subr.mxu0 0.0
        %2059 = vmatpush2.msra.mxu0 0.0
        %2060 = vmatprep.subr.mxu0 0.0
        %2061 = vmatpush2.msra.mxu0 0.0
        %2062 = vmatprep.subr.mxu0 0.0
        %2063 = vmatpush2.msra.mxu0 0.0
        %2064 = vmatprep.subr.mxu0 0.0
        %2065 = vmatpush2.msra.mxu0 0.0
        %2066 = vmatprep.subr.mxu0 0.0
        %2067 = vmatpush2.msra.mxu0 0.0
        %2068 = vmatprep.subr.mxu0 0.0
        %2069 = vmatpush2.msra.mxu0 0.0
        %2070 = vmatprep.subr.mxu0 0.0
        %2071 = vmatpush2.msra.mxu0 0.0
        %2072 = vmatprep.subr.mxu0 0.0
        %2073 = vmatpush2.msra.mxu0 0.0
        %2074 = vmatprep.subr.mxu0 0.0
        %2075 = vmatpush2.msra.mxu0 0.0
        %2076 = vmatprep.mubr.f32.mxu0 0.0
        %2077 = vmatmul.mubr.f32.gmra.mxu0 %v2008
        %v2078 = vpop.f32.mrf.mxu0
        %v2079 = vadd.f32 0.0, %v2078
        %v2080 = vpop.f32.mrf.mxu0
        %2081 = vmatprep.mubr.f32.mxu0 0.0
        %2082 = vmatmul.mubr.f32.gmra.mxu0 %v2010
        %v2083 = vpop.f32.mrf.mxu0
        %v2084 = vadd.f32 0.0, %v2083
        %v2085 = vpop.f32.mrf.mxu0
        %2086 = vdwg.mxu0
        %v2089 = vcombine.high %v2079, %v2079
        %v2091 = vunpack.c.l.s4 1983009808
        %v2092 = vunpack.c.0.s8 %v2091
        %v2093 = vlaneseq
        %v2094 = vshrl.u32 %v2093, 7
        %v2095 = vsub.s32 %v2092, %v2094
        %v2096 = vrot.slane %v2079, %v2095
        %v2098 = vunpack.c.l.s4 1983009808
        %v2099 = vunpack.c.0.s8 %v2098
        %v2100 = vlaneseq
        %v2101 = vshrl.u32 %v2100, 7
        %v2102 = vsub.s32 %v2099, %v2101
        %v2103 = vrot.slane %v2089, %v2102
        %v2104 = vcombine.high %v2096, %v2096
        %v2105 = vcombine.high %v2103, %v2103
        %v2106 = vcombine.high %v2084, %v2084
        %v2108 = vunpack.c.l.s4 1983009808
        %v2109 = vunpack.c.0.s8 %v2108
        %v2110 = vlaneseq
        %v2111 = vshrl.u32 %v2110, 7
        %v2112 = vsub.s32 %v2109, %v2111
        %v2113 = vrot.slane %v2084, %v2112
        %v2115 = vunpack.c.l.s4 1983009808
        %v2116 = vunpack.c.0.s8 %v2115
        %v2117 = vlaneseq
        %v2118 = vshrl.u32 %v2117, 7
        %v2119 = vsub.s32 %v2116, %v2118
        %v2120 = vrot.slane %v2106, %v2119
        %v2121 = vcombine.high %v2113, %v2113
        %v2122 = vcombine.high %v2120, %v2120
        %v2131 = vadd.f32 %v1989, %v2096
        %v2132 = vadd.f32 %v1990, %v2104
        %v2133 = vadd.f32 %v1991, %v2103
        %v2134 = vadd.f32 %v1992, %v2105
        %v2135 = vadd.f32 %v1993, %v2113
        %v2136 = vadd.f32 %v1994, %v2121
        %v2137 = vadd.f32 %v1995, %v2120
        %v2138 = vadd.f32 %v1996, %v2122
        %v2140 = vlaneseq
        %v2141 = vshrl.u32 %v2140, 7
        %v2142 = vsub.s32 0, %v2141
        %v2143 = vrot.slane %v1377, %v2142
        %v2145 = vadd.f32 %v2131, %v2143
        %v2146 = vadd.f32 %v2132, %v2143
        %v2147 = vadd.f32 %v2133, %v2143
        %v2148 = vadd.f32 %v2134, %v2143
        %v2149 = vadd.f32 %v2135, %v2143
        %v2150 = vadd.f32 %v2136, %v2143
        %v2151 = vadd.f32 %v2137, %v2143
        %v2152 = vadd.f32 %v2138, %v2143
        %vm2153 = vcmask 254976
        %2154 = vst.msk [vmem:[%s283] sm:$0x3] %vm2153, %v2145
        %2155 = vst.msk [vmem:[%s283 + $0x2] sm:$0x3] %vm2153, %v2146
        %2156 = vst.msk [vmem:[%s283 + $0x4] sm:$0x3] %vm2153, %v2147
        %2157 = vst.msk [vmem:[%s283 + $0x6] sm:$0x3] %vm2153, %v2148
        %2158 = vst.msk [vmem:[%s283 + $0x8] sm:$0x3] %vm2153, %v2149
        %2159 = vst.msk [vmem:[%s283 + $0xa] sm:$0x3] %vm2153, %v2150
        %2160 = vst.msk [vmem:[%s283 + $0xc] sm:$0x3] %vm2153, %v2151
        %2161 = vst.msk [vmem:[%s283 + $0xe] sm:$0x3] %vm2153, %v2152
        %s2162 = sand.u32 %s198, 1
        %s2163 = scalar_lea.sflag [#allocation3], %s2162
        %s2164 = sand.u32 %s198, 1
        %s2165 = smul.addr %s2164, 16
        %s2166 = scalar_lea.vmem [#allocation2], %s2165
        // Predicated region
        $region53: #{tpu_custom_call.1} parent=51 // pred_check
          %p2167 = pneg %p208
        $region54: #{tpu_custom_call.1} parent=51 // pred_check_branch
          %2169 = sbr.rel (%p2167) target = $region56
        $region55: #{tpu_custom_call.1} parent=51 // pred_region
          %s2170 = smul.u32 8, %s22
          %s2172 = ssub.s32 256, 256
          %2173 = vsyncadd %s2163, %s2172
          %s2174 = smul.addr %s2170, 32
          %s2175 = scalar_lea.hbm %s8, %s2174
          %s2176 = sshll.u32 %s2166, 4
          %s2177 = int_to_ptr.vmem [resolvable:$true] %s2176
          %2182 = dma.vmem_to_hbm [thread:$0]  %s2177, 256, %s2175, %s2163, 32, 32, 2
        $region56: #{tpu_custom_call.1} parent=51 // pred_fallthru
          _
      $region52: #{tpu_custom_call.1} parent=5 // pred_fallthru
        _
      %p2183 = scmp.le.s32.totalorder 2, %s17
      // Predicated region
      $region57: #{tpu_custom_call.1} parent=5 // pred_check
        %p2184 = pneg %p2183
      $region58: #{tpu_custom_call.1} parent=5 // pred_check_branch
        %2186 = sbr.rel (%p2184) target = $region60
      $region59: #{tpu_custom_call.1} parent=5 // pred_region
        %s2187 = ssub.s32 %s17, 2
        // Predicated region
        $region61: #{tpu_custom_call.1} parent=59 // pred_check
          %p2188 = pneg %p214
        $region62: #{tpu_custom_call.1} parent=59 // pred_check_branch
          %2190 = sbr.rel (%p2188) target = $region64
        $region63: #{tpu_custom_call.1} parent=59 // pred_region
          %s2191 = sand.u32 %s199, 1
          %s2192 = scalar_lea.sflag [#allocation3], %s2191
          %s2193 = sand.u32 %s199, 1
          %s2194 = smul.addr %s2193, 16
          %s2195 = scalar_lea.vmem [#allocation2], %s2194
          %2196 = dma.done %s2192, 256
        $region64: #{tpu_custom_call.1} parent=59 // pred_fallthru
          _
      $region60: #{tpu_custom_call.1} parent=5 // pred_fallthru
        _
    $region6: #{tpu_custom_call.1} parent=1 // loop_footer
      %s21 = sadd.s32 1, %s17
    $region7: #{tpu_custom_call.1} parent=1 // loop_footer_branch
      %16 = sbr.rel target = $region3
    $region8: #{tpu_custom_call.1} parent=1 // loop_exit
      _
    %2197 = vsyncpa [#allocation3], 1
    %s2198 = scalar_lea.sflag [#allocation3], 1
    %2199 = vsyncpa %s2198, 1

</llo_original>
